<compile_context>
chip_gen: v7x
topology: tpu7x:2x2x1
jax: 0.10.0
libtpu: 0.0.40
codegen_flags: <defaults>
</compile_context>

<pallas_src>
import jax
import jax.numpy as jnp
from jax.experimental import pallas as pl
from jax.experimental.pallas import tpu as pltpu


def _round_up(x, m):
    return ((x + m - 1) // m) * m


def melody_lstm_kernel(x_ref, wih_ref, whh_ref, b_ref, fcw_ref, fcb_ref, out_ref):
    """Forward pass for one batch block.

    x_ref   : (Bb, T, I)       batch-first input block
    wih_ref : (I, 4*GP)        input->gates weights, each gate padded to GP(=128) lanes
    whh_ref : (GP, 4*GP)       hidden->gates weights, rows >= H zero-padded
    b_ref   : (1, 4*GP)        combined bias (b_ih + b_hh), gate-padded
    fcw_ref : (GP, O)          fc weight, rows >= H zero-padded
    fcb_ref : (1, O)           fc bias
    out_ref : (Bb, O)          sigmoid(fc(h_T))
    """
    Bb, T, I = x_ref.shape
    GP = whh_ref.shape[0]          # padded per-gate width (multiple of 128)

    # ---- Hoisted input projection: one big matmul feeds all T timesteps. ----
    # (Bb, T, I) -> (Bb*T, I) keeps the lane dim, only merges leading dims (free relayout).
    x2d = x_ref[...].reshape(Bb * T, I)
    gx = jnp.dot(x2d, wih_ref[...], preferred_element_type=jnp.float32) + b_ref[...]
    gx = gx.reshape(Bb, T, 4 * GP)            # inverse leading-dim split (free)

    whh = whh_ref[...]                        # (GP, 4*GP), kept resident in vregs/VMEM

    h = jnp.zeros((Bb, GP), jnp.float32)
    c = jnp.zeros((Bb, GP), jnp.float32)

    # ---- Fully unrolled recurrence (T static, tiny body). ----
    for t in range(T):
        gates = gx[:, t, :] + jnp.dot(h, whh, preferred_element_type=jnp.float32)
        # Each gate slab is a full 128-lane-aligned block: no sub-vreg extracts.
        i_g = jax.nn.sigmoid(gates[:, 0 * GP:1 * GP])
        f_g = jax.nn.sigmoid(gates[:, 1 * GP:2 * GP])
        g_g = jnp.tanh(gates[:, 2 * GP:3 * GP])
        o_g = jax.nn.sigmoid(gates[:, 3 * GP:4 * GP])
        c = f_g * c + i_g * g_g
        h = o_g * jnp.tanh(c)
        # Padded lanes: gates_pad == 0 -> i,f,o = 0.5, g = 0, so c_pad / h_pad stay 0.

    logits = (
        jnp.dot(h, fcw_ref[...], preferred_element_type=jnp.float32) + fcb_ref[...]
    )
    out_ref[...] = jax.nn.sigmoid(logits).astype(out_ref.dtype)


def melody_lstm_forward(x, params, *, block_b=None):
    """x: (B, T, I) float32 (batch_first, like the PyTorch module). Returns (B, O)."""
    B, T, I = x.shape
    wih_p = params["wih_p"]    # (I, 4*GP)
    whh_p = params["whh_p"]    # (GP, 4*GP)
    bias_p = params["bias_p"]  # (1, 4*GP)
    fcw_p = params["fcw_p"]    # (GP, O)
    fcb = params["fcb"]        # (1, O)
    GP = whh_p.shape[0]
    O = fcw_p.shape[1]

    if block_b is None:
        block_b = B            # one block at small B; for large B use a multiple of 8
    assert B % block_b == 0

    # TODO(synk): for very long T on v7x (64 MiB VMEM) add a T-chunked grid that streams
    # x / gates_x blocks while carrying h,c in scratch; unnecessary at these sizes.
    return pl.pallas_call(
        melody_lstm_kernel,
        out_shape=jax.ShapeDtypeStruct((B, O), jnp.float32),
        grid=(B // block_b,),
        in_specs=[
            pl.BlockSpec((block_b, T, I), lambda i: (i, 0, 0)),
            pl.BlockSpec((I, 4 * GP), lambda i: (0, 0)),
            pl.BlockSpec((GP, 4 * GP), lambda i: (0, 0)),
            pl.BlockSpec((1, 4 * GP), lambda i: (0, 0)),
            pl.BlockSpec((GP, O), lambda i: (0, 0)),
            pl.BlockSpec((1, O), lambda i: (0, 0)),
        ],
        out_specs=pl.BlockSpec((block_b, O), lambda i: (i, 0)),
        compiler_params=pltpu.CompilerParams(
            dimension_semantics=("parallel",)),
    )(x, wih_p, whh_p, bias_p, fcw_p, fcb)


def init_params(key, input_size, hidden_size, output_size):
    """PyTorch-style U(-1/sqrt(H), 1/sqrt(H)) init; returns raw + lane-padded weights."""
    I, H, O = input_size, hidden_size, output_size
    k = float(1.0 / (H ** 0.5))
    keys = jax.random.split(key, 6)
    w_ih = jax.random.uniform(keys[0], (4 * H, I), jnp.float32, -k, k)
    w_hh = jax.random.uniform(keys[1], (4 * H, H), jnp.float32, -k, k)
    b_ih = jax.random.uniform(keys[2], (4 * H,), jnp.float32, -k, k)
    b_hh = jax.random.uniform(keys[3], (4 * H,), jnp.float32, -k, k)
    fc_w = jax.random.uniform(keys[4], (O, H), jnp.float32, -k, k)
    fc_b = jax.random.uniform(keys[5], (O,), jnp.float32, -k, k)

    GP = max(128, _round_up(H, 128))

    def pad_gate_lanes(w_t):  # (K, 4H) -> (K, 4*GP); gate g -> lanes [g*GP, g*GP+H)
        K = w_t.shape[0]
        out = jnp.zeros((K, 4 * GP), jnp.float32)
        for g in range(4):
            out = out.at[:, g * GP:g * GP + H].set(w_t[:, g * H:(g + 1) * H])
        return out

    wih_p = pad_gate_lanes(w_ih.T)                                    # (I, 4*GP)
    whh_p = jnp.zeros((GP, 4 * GP), jnp.float32).at[:H].set(pad_gate_lanes(w_hh.T))
    bias_p = pad_gate_lanes((b_ih + b_hh).reshape(1, -1))             # (1, 4*GP)
    fcw_p = jnp.zeros((GP, O), jnp.float32).at[:H].set(fc_w.T)        # (GP, O)
    fcb = fc_b.reshape(1, -1)                                         # (1, O)

    return {
        # raw layouts (for the pure-JAX reference)
        "wih_t": w_ih.T, "whh_t": w_hh.T, "bias": (b_ih + b_hh).reshape(1, -1),
        "fcw_t": fc_w.T,
        # lane-padded layouts (consumed by the kernel)
        "wih_p": wih_p, "whh_p": whh_p, "bias_p": bias_p, "fcw_p": fcw_p, "fcb": fcb,
    }


def reference_forward(x, params):
    """Pure-JAX reference (standard LSTM math with unpadded weights)."""
    B, T, I = x.shape
    H = params["whh_t"].shape[0]
    h = jnp.zeros((B, H), jnp.float32)
    c = jnp.zeros((B, H), jnp.float32)
    for t in range(T):
        gates = x[:, t, :] @ params["wih_t"] + h @ params["whh_t"] + params["bias"]
        i_g = jax.nn.sigmoid(gates[:, 0 * H:1 * H])
        f_g = jax.nn.sigmoid(gates[:, 1 * H:2 * H])
        g_g = jnp.tanh(gates[:, 2 * H:3 * H])
        o_g = jax.nn.sigmoid(gates[:, 3 * H:4 * H])
        c = f_g * c + i_g * g_g
        h = o_g * jnp.tanh(c)
    return jax.nn.sigmoid(h @ params["fcw_t"] + params["fcb"])


if __name__ == "__main__":
    # Shapes implied by the module: one-hot notes (I=24), seq of 8, hidden 32, binary output.
    B, T, I, H, O = 2, 8, 24, 32, 1

    key = jax.random.PRNGKey(0)
    k_x, k_p = jax.random.split(key)
    x = jax.random.normal(k_x, (B, T, I), jnp.float32)
    params = init_params(k_p, I, H, O)

    out = melody_lstm_forward(x, params)
    out = jax.block_until_ready(out)

    ref = reference_forward(x, params)
    assert out.shape == (B, O)
    assert jnp.allclose(out, ref, atol=1e-5, rtol=1e-5), (out, ref)

    print("KERNEL_OK")
</pallas_src>

<mosaic_0001>
module attributes {stable_mosaic.version = 11 : i64} {
  func.func @melody_lstm_kernel(%arg0: i32, %arg1: memref<2x8x24xf32, #tpu.memory_space<vmem>>, %arg2: memref<24x512xf32, #tpu.memory_space<vmem>>, %arg3: memref<128x512xf32, #tpu.memory_space<vmem>>, %arg4: memref<1x512xf32, #tpu.memory_space<vmem>>, %arg5: memref<128x1xf32, #tpu.memory_space<vmem>>, %arg6: memref<1x1xf32, #tpu.memory_space<vmem>>, %arg7: memref<2x1xf32, #tpu.memory_space<vmem>>) attributes {dimension_semantics = [#tpu.dimension_semantics<parallel>], iteration_bounds = array<i64: 1>, scalar_prefetch = 0 : i64, scratch_operands = 0 : i64, tpu.core_type = #tpu.core_type<tc>, window_params = [{transform_indices = @transform_0, window_bounds = array<i64: 2, 8, 24>}, {pipeline_mode = #tpu.pipeline_mode<synchronous>, transform_indices = @transform_1, window_bounds = array<i64: 24, 512>}, {pipeline_mode = #tpu.pipeline_mode<synchronous>, transform_indices = @transform_2, window_bounds = array<i64: 128, 512>}, {pipeline_mode = #tpu.pipeline_mode<synchronous>, transform_indices = @transform_3, window_bounds = array<i64: 1, 512>}, {pipeline_mode = #tpu.pipeline_mode<synchronous>, transform_indices = @transform_4, window_bounds = array<i64: 128, 1>}, {pipeline_mode = #tpu.pipeline_mode<synchronous>, transform_indices = @transform_5, window_bounds = array<i64: 1, 1>}, {transform_indices = @transform_6, window_bounds = array<i64: 2, 1>}]} {
    %c0 = arith.constant 0 : index
    %c0_0 = arith.constant 0 : index
    %c0_1 = arith.constant 0 : index
    %0 = vector.load %arg1[%c0, %c0_0, %c0_1] : memref<2x8x24xf32, #tpu.memory_space<vmem>>, vector<2x8x24xf32>
    %1 = vector.shape_cast %0 : vector<2x8x24xf32> to vector<16x24xf32>
    %c0_2 = arith.constant 0 : index
    %c0_3 = arith.constant 0 : index
    %2 = vector.load %arg2[%c0_2, %c0_3] : memref<24x512xf32, #tpu.memory_space<vmem>>, vector<24x512xf32>
    %cst = arith.constant dense<0.000000e+00> : vector<16x512xf32>
    %3 = tpu.matmul %1, %2, %cst {dimension_numbers = #tpu.dot_dimension_numbers<[1], [0], [0], [1], [0, 0, 1, 1], [], []>} : vector<16x24xf32>, vector<24x512xf32>, vector<16x512xf32> -> vector<16x512xf32>
    %c0_4 = arith.constant 0 : index
    %c0_5 = arith.constant 0 : index
    %4 = vector.load %arg4[%c0_4, %c0_5] : memref<1x512xf32, #tpu.memory_space<vmem>>, vector<1x512xf32>
    %5 = vector.broadcast %4 : vector<1x512xf32> to vector<16x512xf32>
    %6 = arith.addf %3, %5 : vector<16x512xf32>
    %7 = vector.shape_cast %6 : vector<16x512xf32> to vector<2x8x512xf32>
    %c0_6 = arith.constant 0 : index
    %c0_7 = arith.constant 0 : index
    %8 = vector.load %arg3[%c0_6, %c0_7] : memref<128x512xf32, #tpu.memory_space<vmem>>, vector<128x512xf32>
    %cst_8 = arith.constant 0.000000e+00 : f32
    %9 = vector.broadcast %cst_8 : f32 to vector<2x128xf32>
    %cst_9 = arith.constant 0.000000e+00 : f32
    %10 = vector.broadcast %cst_9 : f32 to vector<2x128xf32>
    %11 = vector.extract_strided_slice %7 {offsets = [0, 0, 0], sizes = [2, 1, 512], strides = [1, 1, 1]} : vector<2x8x512xf32> to vector<2x1x512xf32>
    %12 = vector.shape_cast %11 : vector<2x1x512xf32> to vector<2x512xf32>
    %cst_10 = arith.constant dense<0.000000e+00> : vector<2x512xf32>
    %13 = tpu.matmul %9, %8, %cst_10 {dimension_numbers = #tpu.dot_dimension_numbers<[1], [0], [0], [1], [0, 0, 1, 1], [], []>} : vector<2x128xf32>, vector<128x512xf32>, vector<2x512xf32> -> vector<2x512xf32>
    %14 = arith.addf %12, %13 : vector<2x512xf32>
    %15 = vector.extract_strided_slice %14 {offsets = [0, 0], sizes = [2, 128], strides = [1, 1]} : vector<2x512xf32> to vector<2x128xf32>
    %16 = arith.negf %15 : vector<2x128xf32>
    %17 = math.exp %16 : vector<2x128xf32>
    %cst_11 = arith.constant 1.000000e+00 : f32
    %18 = vector.broadcast %cst_11 : f32 to vector<2x128xf32>
    %19 = arith.addf %18, %17 : vector<2x128xf32>
    %20 = arith.divf %18, %19 : vector<2x128xf32>
    %21 = vector.extract_strided_slice %14 {offsets = [0, 128], sizes = [2, 128], strides = [1, 1]} : vector<2x512xf32> to vector<2x128xf32>
    %22 = arith.negf %21 : vector<2x128xf32>
    %23 = math.exp %22 : vector<2x128xf32>
    %cst_12 = arith.constant 1.000000e+00 : f32
    %24 = vector.broadcast %cst_12 : f32 to vector<2x128xf32>
    %25 = arith.addf %24, %23 : vector<2x128xf32>
    %26 = arith.divf %24, %25 : vector<2x128xf32>
    %27 = vector.extract_strided_slice %14 {offsets = [0, 256], sizes = [2, 128], strides = [1, 1]} : vector<2x512xf32> to vector<2x128xf32>
    %28 = math.tanh %27 : vector<2x128xf32>
    %29 = vector.extract_strided_slice %14 {offsets = [0, 384], sizes = [2, 128], strides = [1, 1]} : vector<2x512xf32> to vector<2x128xf32>
    %30 = arith.negf %29 : vector<2x128xf32>
    %31 = math.exp %30 : vector<2x128xf32>
    %cst_13 = arith.constant 1.000000e+00 : f32
    %32 = vector.broadcast %cst_13 : f32 to vector<2x128xf32>
    %33 = arith.addf %32, %31 : vector<2x128xf32>
    %34 = arith.divf %32, %33 : vector<2x128xf32>
    %35 = arith.mulf %26, %10 : vector<2x128xf32>
    %36 = arith.mulf %20, %28 : vector<2x128xf32>
    %37 = arith.addf %35, %36 : vector<2x128xf32>
    %38 = math.tanh %37 : vector<2x128xf32>
    %39 = arith.mulf %34, %38 : vector<2x128xf32>
    %40 = vector.extract_strided_slice %7 {offsets = [0, 1, 0], sizes = [2, 1, 512], strides = [1, 1, 1]} : vector<2x8x512xf32> to vector<2x1x512xf32>
    %41 = vector.shape_cast %40 : vector<2x1x512xf32> to vector<2x512xf32>
    %cst_14 = arith.constant dense<0.000000e+00> : vector<2x512xf32>
    %42 = tpu.matmul %39, %8, %cst_14 {dimension_numbers = #tpu.dot_dimension_numbers<[1], [0], [0], [1], [0, 0, 1, 1], [], []>} : vector<2x128xf32>, vector<128x512xf32>, vector<2x512xf32> -> vector<2x512xf32>
    %43 = arith.addf %41, %42 : vector<2x512xf32>
    %44 = vector.extract_strided_slice %43 {offsets = [0, 0], sizes = [2, 128], strides = [1, 1]} : vector<2x512xf32> to vector<2x128xf32>
    %45 = arith.negf %44 : vector<2x128xf32>
    %46 = math.exp %45 : vector<2x128xf32>
    %cst_15 = arith.constant 1.000000e+00 : f32
    %47 = vector.broadcast %cst_15 : f32 to vector<2x128xf32>
    %48 = arith.addf %47, %46 : vector<2x128xf32>
    %49 = arith.divf %47, %48 : vector<2x128xf32>
    %50 = vector.extract_strided_slice %43 {offsets = [0, 128], sizes = [2, 128], strides = [1, 1]} : vector<2x512xf32> to vector<2x128xf32>
    %51 = arith.negf %50 : vector<2x128xf32>
    %52 = math.exp %51 : vector<2x128xf32>
    %cst_16 = arith.constant 1.000000e+00 : f32
    %53 = vector.broadcast %cst_16 : f32 to vector<2x128xf32>
    %54 = arith.addf %53, %52 : vector<2x128xf32>
    %55 = arith.divf %53, %54 : vector<2x128xf32>
    %56 = vector.extract_strided_slice %43 {offsets = [0, 256], sizes = [2, 128], strides = [1, 1]} : vector<2x512xf32> to vector<2x128xf32>
    %57 = math.tanh %56 : vector<2x128xf32>
    %58 = vector.extract_strided_slice %43 {offsets = [0, 384], sizes = [2, 128], strides = [1, 1]} : vector<2x512xf32> to vector<2x128xf32>
    %59 = arith.negf %58 : vector<2x128xf32>
    %60 = math.exp %59 : vector<2x128xf32>
    %cst_17 = arith.constant 1.000000e+00 : f32
    %61 = vector.broadcast %cst_17 : f32 to vector<2x128xf32>
    %62 = arith.addf %61, %60 : vector<2x128xf32>
    %63 = arith.divf %61, %62 : vector<2x128xf32>
    %64 = arith.mulf %55, %37 : vector<2x128xf32>
    %65 = arith.mulf %49, %57 : vector<2x128xf32>
    %66 = arith.addf %64, %65 : vector<2x128xf32>
    %67 = math.tanh %66 : vector<2x128xf32>
    %68 = arith.mulf %63, %67 : vector<2x128xf32>
    %69 = vector.extract_strided_slice %7 {offsets = [0, 2, 0], sizes = [2, 1, 512], strides = [1, 1, 1]} : vector<2x8x512xf32> to vector<2x1x512xf32>
    %70 = vector.shape_cast %69 : vector<2x1x512xf32> to vector<2x512xf32>
    %cst_18 = arith.constant dense<0.000000e+00> : vector<2x512xf32>
    %71 = tpu.matmul %68, %8, %cst_18 {dimension_numbers = #tpu.dot_dimension_numbers<[1], [0], [0], [1], [0, 0, 1, 1], [], []>} : vector<2x128xf32>, vector<128x512xf32>, vector<2x512xf32> -> vector<2x512xf32>
    %72 = arith.addf %70, %71 : vector<2x512xf32>
    %73 = vector.extract_strided_slice %72 {offsets = [0, 0], sizes = [2, 128], strides = [1, 1]} : vector<2x512xf32> to vector<2x128xf32>
    %74 = arith.negf %73 : vector<2x128xf32>
    %75 = math.exp %74 : vector<2x128xf32>
    %cst_19 = arith.constant 1.000000e+00 : f32
    %76 = vector.broadcast %cst_19 : f32 to vector<2x128xf32>
    %77 = arith.addf %76, %75 : vector<2x128xf32>
    %78 = arith.divf %76, %77 : vector<2x128xf32>
    %79 = vector.extract_strided_slice %72 {offsets = [0, 128], sizes = [2, 128], strides = [1, 1]} : vector<2x512xf32> to vector<2x128xf32>
    %80 = arith.negf %79 : vector<2x128xf32>
    %81 = math.exp %80 : vector<2x128xf32>
    %cst_20 = arith.constant 1.000000e+00 : f32
    %82 = vector.broadcast %cst_20 : f32 to vector<2x128xf32>
    %83 = arith.addf %82, %81 : vector<2x128xf32>
    %84 = arith.divf %82, %83 : vector<2x128xf32>
    %85 = vector.extract_strided_slice %72 {offsets = [0, 256], sizes = [2, 128], strides = [1, 1]} : vector<2x512xf32> to vector<2x128xf32>
    %86 = math.tanh %85 : vector<2x128xf32>
    %87 = vector.extract_strided_slice %72 {offsets = [0, 384], sizes = [2, 128], strides = [1, 1]} : vector<2x512xf32> to vector<2x128xf32>
    %88 = arith.negf %87 : vector<2x128xf32>
    %89 = math.exp %88 : vector<2x128xf32>
    %cst_21 = arith.constant 1.000000e+00 : f32
    %90 = vector.broadcast %cst_21 : f32 to vector<2x128xf32>
    %91 = arith.addf %90, %89 : vector<2x128xf32>
    %92 = arith.divf %90, %91 : vector<2x128xf32>
    %93 = arith.mulf %84, %66 : vector<2x128xf32>
    %94 = arith.mulf %78, %86 : vector<2x128xf32>
    %95 = arith.addf %93, %94 : vector<2x128xf32>
    %96 = math.tanh %95 : vector<2x128xf32>
    %97 = arith.mulf %92, %96 : vector<2x128xf32>
    %98 = vector.extract_strided_slice %7 {offsets = [0, 3, 0], sizes = [2, 1, 512], strides = [1, 1, 1]} : vector<2x8x512xf32> to vector<2x1x512xf32>
    %99 = vector.shape_cast %98 : vector<2x1x512xf32> to vector<2x512xf32>
    %cst_22 = arith.constant dense<0.000000e+00> : vector<2x512xf32>
    %100 = tpu.matmul %97, %8, %cst_22 {dimension_numbers = #tpu.dot_dimension_numbers<[1], [0], [0], [1], [0, 0, 1, 1], [], []>} : vector<2x128xf32>, vector<128x512xf32>, vector<2x512xf32> -> vector<2x512xf32>
    %101 = arith.addf %99, %100 : vector<2x512xf32>
    %102 = vector.extract_strided_slice %101 {offsets = [0, 0], sizes = [2, 128], strides = [1, 1]} : vector<2x512xf32> to vector<2x128xf32>
    %103 = arith.negf %102 : vector<2x128xf32>
    %104 = math.exp %103 : vector<2x128xf32>
    %cst_23 = arith.constant 1.000000e+00 : f32
    %105 = vector.broadcast %cst_23 : f32 to vector<2x128xf32>
    %106 = arith.addf %105, %104 : vector<2x128xf32>
    %107 = arith.divf %105, %106 : vector<2x128xf32>
    %108 = vector.extract_strided_slice %101 {offsets = [0, 128], sizes = [2, 128], strides = [1, 1]} : vector<2x512xf32> to vector<2x128xf32>
    %109 = arith.negf %108 : vector<2x128xf32>
    %110 = math.exp %109 : vector<2x128xf32>
    %cst_24 = arith.constant 1.000000e+00 : f32
    %111 = vector.broadcast %cst_24 : f32 to vector<2x128xf32>
    %112 = arith.addf %111, %110 : vector<2x128xf32>
    %113 = arith.divf %111, %112 : vector<2x128xf32>
    %114 = vector.extract_strided_slice %101 {offsets = [0, 256], sizes = [2, 128], strides = [1, 1]} : vector<2x512xf32> to vector<2x128xf32>
    %115 = math.tanh %114 : vector<2x128xf32>
    %116 = vector.extract_strided_slice %101 {offsets = [0, 384], sizes = [2, 128], strides = [1, 1]} : vector<2x512xf32> to vector<2x128xf32>
    %117 = arith.negf %116 : vector<2x128xf32>
    %118 = math.exp %117 : vector<2x128xf32>
    %cst_25 = arith.constant 1.000000e+00 : f32
    %119 = vector.broadcast %cst_25 : f32 to vector<2x128xf32>
    %120 = arith.addf %119, %118 : vector<2x128xf32>
    %121 = arith.divf %119, %120 : vector<2x128xf32>
    %122 = arith.mulf %113, %95 : vector<2x128xf32>
    %123 = arith.mulf %107, %115 : vector<2x128xf32>
    %124 = arith.addf %122, %123 : vector<2x128xf32>
    %125 = math.tanh %124 : vector<2x128xf32>
    %126 = arith.mulf %121, %125 : vector<2x128xf32>
    %127 = vector.extract_strided_slice %7 {offsets = [0, 4, 0], sizes = [2, 1, 512], strides = [1, 1, 1]} : vector<2x8x512xf32> to vector<2x1x512xf32>
    %128 = vector.shape_cast %127 : vector<2x1x512xf32> to vector<2x512xf32>
    %cst_26 = arith.constant dense<0.000000e+00> : vector<2x512xf32>
    %129 = tpu.matmul %126, %8, %cst_26 {dimension_numbers = #tpu.dot_dimension_numbers<[1], [0], [0], [1], [0, 0, 1, 1], [], []>} : vector<2x128xf32>, vector<128x512xf32>, vector<2x512xf32> -> vector<2x512xf32>
    %130 = arith.addf %128, %129 : vector<2x512xf32>
    %131 = vector.extract_strided_slice %130 {offsets = [0, 0], sizes = [2, 128], strides = [1, 1]} : vector<2x512xf32> to vector<2x128xf32>
    %132 = arith.negf %131 : vector<2x128xf32>
    %133 = math.exp %132 : vector<2x128xf32>
    %cst_27 = arith.constant 1.000000e+00 : f32
    %134 = vector.broadcast %cst_27 : f32 to vector<2x128xf32>
    %135 = arith.addf %134, %133 : vector<2x128xf32>
    %136 = arith.divf %134, %135 : vector<2x128xf32>
    %137 = vector.extract_strided_slice %130 {offsets = [0, 128], sizes = [2, 128], strides = [1, 1]} : vector<2x512xf32> to vector<2x128xf32>
    %138 = arith.negf %137 : vector<2x128xf32>
    %139 = math.exp %138 : vector<2x128xf32>
    %cst_28 = arith.constant 1.000000e+00 : f32
    %140 = vector.broadcast %cst_28 : f32 to vector<2x128xf32>
    %141 = arith.addf %140, %139 : vector<2x128xf32>
    %142 = arith.divf %140, %141 : vector<2x128xf32>
    %143 = vector.extract_strided_slice %130 {offsets = [0, 256], sizes = [2, 128], strides = [1, 1]} : vector<2x512xf32> to vector<2x128xf32>
    %144 = math.tanh %143 : vector<2x128xf32>
    %145 = vector.extract_strided_slice %130 {offsets = [0, 384], sizes = [2, 128], strides = [1, 1]} : vector<2x512xf32> to vector<2x128xf32>
    %146 = arith.negf %145 : vector<2x128xf32>
    %147 = math.exp %146 : vector<2x128xf32>
    %cst_29 = arith.constant 1.000000e+00 : f32
    %148 = vector.broadcast %cst_29 : f32 to vector<2x128xf32>
    %149 = arith.addf %148, %147 : vector<2x128xf32>
    %150 = arith.divf %148, %149 : vector<2x128xf32>
    %151 = arith.mulf %142, %124 : vector<2x128xf32>
    %152 = arith.mulf %136, %144 : vector<2x128xf32>
    %153 = arith.addf %151, %152 : vector<2x128xf32>
    %154 = math.tanh %153 : vector<2x128xf32>
    %155 = arith.mulf %150, %154 : vector<2x128xf32>
    %156 = vector.extract_strided_slice %7 {offsets = [0, 5, 0], sizes = [2, 1, 512], strides = [1, 1, 1]} : vector<2x8x512xf32> to vector<2x1x512xf32>
    %157 = vector.shape_cast %156 : vector<2x1x512xf32> to vector<2x512xf32>
    %cst_30 = arith.constant dense<0.000000e+00> : vector<2x512xf32>
    %158 = tpu.matmul %155, %8, %cst_30 {dimension_numbers = #tpu.dot_dimension_numbers<[1], [0], [0], [1], [0, 0, 1, 1], [], []>} : vector<2x128xf32>, vector<128x512xf32>, vector<2x512xf32> -> vector<2x512xf32>
    %159 = arith.addf %157, %158 : vector<2x512xf32>
    %160 = vector.extract_strided_slice %159 {offsets = [0, 0], sizes = [2, 128], strides = [1, 1]} : vector<2x512xf32> to vector<2x128xf32>
    %161 = arith.negf %160 : vector<2x128xf32>
    %162 = math.exp %161 : vector<2x128xf32>
    %cst_31 = arith.constant 1.000000e+00 : f32
    %163 = vector.broadcast %cst_31 : f32 to vector<2x128xf32>
    %164 = arith.addf %163, %162 : vector<2x128xf32>
    %165 = arith.divf %163, %164 : vector<2x128xf32>
    %166 = vector.extract_strided_slice %159 {offsets = [0, 128], sizes = [2, 128], strides = [1, 1]} : vector<2x512xf32> to vector<2x128xf32>
    %167 = arith.negf %166 : vector<2x128xf32>
    %168 = math.exp %167 : vector<2x128xf32>
    %cst_32 = arith.constant 1.000000e+00 : f32
    %169 = vector.broadcast %cst_32 : f32 to vector<2x128xf32>
    %170 = arith.addf %169, %168 : vector<2x128xf32>
    %171 = arith.divf %169, %170 : vector<2x128xf32>
    %172 = vector.extract_strided_slice %159 {offsets = [0, 256], sizes = [2, 128], strides = [1, 1]} : vector<2x512xf32> to vector<2x128xf32>
    %173 = math.tanh %172 : vector<2x128xf32>
    %174 = vector.extract_strided_slice %159 {offsets = [0, 384], sizes = [2, 128], strides = [1, 1]} : vector<2x512xf32> to vector<2x128xf32>
    %175 = arith.negf %174 : vector<2x128xf32>
    %176 = math.exp %175 : vector<2x128xf32>
    %cst_33 = arith.constant 1.000000e+00 : f32
    %177 = vector.broadcast %cst_33 : f32 to vector<2x128xf32>
    %178 = arith.addf %177, %176 : vector<2x128xf32>
    %179 = arith.divf %177, %178 : vector<2x128xf32>
    %180 = arith.mulf %171, %153 : vector<2x128xf32>
    %181 = arith.mulf %165, %173 : vector<2x128xf32>
    %182 = arith.addf %180, %181 : vector<2x128xf32>
    %183 = math.tanh %182 : vector<2x128xf32>
    %184 = arith.mulf %179, %183 : vector<2x128xf32>
    %185 = vector.extract_strided_slice %7 {offsets = [0, 6, 0], sizes = [2, 1, 512], strides = [1, 1, 1]} : vector<2x8x512xf32> to vector<2x1x512xf32>
    %186 = vector.shape_cast %185 : vector<2x1x512xf32> to vector<2x512xf32>
    %cst_34 = arith.constant dense<0.000000e+00> : vector<2x512xf32>
    %187 = tpu.matmul %184, %8, %cst_34 {dimension_numbers = #tpu.dot_dimension_numbers<[1], [0], [0], [1], [0, 0, 1, 1], [], []>} : vector<2x128xf32>, vector<128x512xf32>, vector<2x512xf32> -> vector<2x512xf32>
    %188 = arith.addf %186, %187 : vector<2x512xf32>
    %189 = vector.extract_strided_slice %188 {offsets = [0, 0], sizes = [2, 128], strides = [1, 1]} : vector<2x512xf32> to vector<2x128xf32>
    %190 = arith.negf %189 : vector<2x128xf32>
    %191 = math.exp %190 : vector<2x128xf32>
    %cst_35 = arith.constant 1.000000e+00 : f32
    %192 = vector.broadcast %cst_35 : f32 to vector<2x128xf32>
    %193 = arith.addf %192, %191 : vector<2x128xf32>
    %194 = arith.divf %192, %193 : vector<2x128xf32>
    %195 = vector.extract_strided_slice %188 {offsets = [0, 128], sizes = [2, 128], strides = [1, 1]} : vector<2x512xf32> to vector<2x128xf32>
    %196 = arith.negf %195 : vector<2x128xf32>
    %197 = math.exp %196 : vector<2x128xf32>
    %cst_36 = arith.constant 1.000000e+00 : f32
    %198 = vector.broadcast %cst_36 : f32 to vector<2x128xf32>
    %199 = arith.addf %198, %197 : vector<2x128xf32>
    %200 = arith.divf %198, %199 : vector<2x128xf32>
    %201 = vector.extract_strided_slice %188 {offsets = [0, 256], sizes = [2, 128], strides = [1, 1]} : vector<2x512xf32> to vector<2x128xf32>
    %202 = math.tanh %201 : vector<2x128xf32>
    %203 = vector.extract_strided_slice %188 {offsets = [0, 384], sizes = [2, 128], strides = [1, 1]} : vector<2x512xf32> to vector<2x128xf32>
    %204 = arith.negf %203 : vector<2x128xf32>
    %205 = math.exp %204 : vector<2x128xf32>
    %cst_37 = arith.constant 1.000000e+00 : f32
    %206 = vector.broadcast %cst_37 : f32 to vector<2x128xf32>
    %207 = arith.addf %206, %205 : vector<2x128xf32>
    %208 = arith.divf %206, %207 : vector<2x128xf32>
    %209 = arith.mulf %200, %182 : vector<2x128xf32>
    %210 = arith.mulf %194, %202 : vector<2x128xf32>
    %211 = arith.addf %209, %210 : vector<2x128xf32>
    %212 = math.tanh %211 : vector<2x128xf32>
    %213 = arith.mulf %208, %212 : vector<2x128xf32>
    %214 = vector.extract_strided_slice %7 {offsets = [0, 7, 0], sizes = [2, 1, 512], strides = [1, 1, 1]} : vector<2x8x512xf32> to vector<2x1x512xf32>
    %215 = vector.shape_cast %214 : vector<2x1x512xf32> to vector<2x512xf32>
    %cst_38 = arith.constant dense<0.000000e+00> : vector<2x512xf32>
    %216 = tpu.matmul %213, %8, %cst_38 {dimension_numbers = #tpu.dot_dimension_numbers<[1], [0], [0], [1], [0, 0, 1, 1], [], []>} : vector<2x128xf32>, vector<128x512xf32>, vector<2x512xf32> -> vector<2x512xf32>
    %217 = arith.addf %215, %216 : vector<2x512xf32>
    %218 = vector.extract_strided_slice %217 {offsets = [0, 0], sizes = [2, 128], strides = [1, 1]} : vector<2x512xf32> to vector<2x128xf32>
    %219 = arith.negf %218 : vector<2x128xf32>
    %220 = math.exp %219 : vector<2x128xf32>
    %cst_39 = arith.constant 1.000000e+00 : f32
    %221 = vector.broadcast %cst_39 : f32 to vector<2x128xf32>
    %222 = arith.addf %221, %220 : vector<2x128xf32>
    %223 = arith.divf %221, %222 : vector<2x128xf32>
    %224 = vector.extract_strided_slice %217 {offsets = [0, 128], sizes = [2, 128], strides = [1, 1]} : vector<2x512xf32> to vector<2x128xf32>
    %225 = arith.negf %224 : vector<2x128xf32>
    %226 = math.exp %225 : vector<2x128xf32>
    %cst_40 = arith.constant 1.000000e+00 : f32
    %227 = vector.broadcast %cst_40 : f32 to vector<2x128xf32>
    %228 = arith.addf %227, %226 : vector<2x128xf32>
    %229 = arith.divf %227, %228 : vector<2x128xf32>
    %230 = vector.extract_strided_slice %217 {offsets = [0, 256], sizes = [2, 128], strides = [1, 1]} : vector<2x512xf32> to vector<2x128xf32>
    %231 = math.tanh %230 : vector<2x128xf32>
    %232 = vector.extract_strided_slice %217 {offsets = [0, 384], sizes = [2, 128], strides = [1, 1]} : vector<2x512xf32> to vector<2x128xf32>
    %233 = arith.negf %232 : vector<2x128xf32>
    %234 = math.exp %233 : vector<2x128xf32>
    %cst_41 = arith.constant 1.000000e+00 : f32
    %235 = vector.broadcast %cst_41 : f32 to vector<2x128xf32>
    %236 = arith.addf %235, %234 : vector<2x128xf32>
    %237 = arith.divf %235, %236 : vector<2x128xf32>
    %238 = arith.mulf %229, %211 : vector<2x128xf32>
    %239 = arith.mulf %223, %231 : vector<2x128xf32>
    %240 = arith.addf %238, %239 : vector<2x128xf32>
    %241 = math.tanh %240 : vector<2x128xf32>
    %242 = arith.mulf %237, %241 : vector<2x128xf32>
    %c0_42 = arith.constant 0 : index
    %c0_43 = arith.constant 0 : index
    %243 = vector.load %arg5[%c0_42, %c0_43] : memref<128x1xf32, #tpu.memory_space<vmem>>, vector<128x1xf32>
    %cst_44 = arith.constant dense<0.000000e+00> : vector<2x1xf32>
    %244 = tpu.matmul %242, %243, %cst_44 {dimension_numbers = #tpu.dot_dimension_numbers<[1], [0], [0], [1], [0, 0, 1, 1], [], []>} : vector<2x128xf32>, vector<128x1xf32>, vector<2x1xf32> -> vector<2x1xf32>
    %c0_45 = arith.constant 0 : index
    %c0_46 = arith.constant 0 : index
    %245 = vector.load %arg6[%c0_45, %c0_46] : memref<1x1xf32, #tpu.memory_space<vmem>>, vector<1x1xf32>
    %246 = vector.broadcast %245 : vector<1x1xf32> to vector<2x1xf32>
    %247 = arith.addf %244, %246 : vector<2x1xf32>
    %248 = arith.negf %247 : vector<2x1xf32>
    %249 = math.exp %248 : vector<2x1xf32>
    %cst_47 = arith.constant 1.000000e+00 : f32
    %250 = vector.broadcast %cst_47 : f32 to vector<2x1xf32>
    %251 = arith.addf %250, %249 : vector<2x1xf32>
    %252 = arith.divf %250, %251 : vector<2x1xf32>
    %c0_48 = arith.constant 0 : index
    %c0_49 = arith.constant 0 : index
    %253 = vector.load %arg7[%c0_48, %c0_49] : memref<2x1xf32, #tpu.memory_space<vmem>>, vector<2x1xf32>
    tpu.vector_store %arg7[%c0_48, %c0_49], %252 {strides = array<i32>} : memref<2x1xf32, #tpu.memory_space<vmem>>, vector<2x1xf32>,
    return
  }
  func.func @transform_0(%arg0: i32) -> (i32, i32, i32) {
    %c0_i32 = arith.constant 0 : i32
    %c0_i32_0 = arith.constant 0 : i32
    %c0_i32_1 = arith.constant 0 : i32
    return %arg0, %c0_i32, %c0_i32_0 : i32, i32, i32
  }
  func.func @transform_1(%arg0: i32) -> (i32, i32) {
    %c0_i32 = arith.constant 0 : i32
    %c0_i32_0 = arith.constant 0 : i32
    %c0_i32_1 = arith.constant 0 : i32
    return %c0_i32, %c0_i32_0 : i32, i32
  }
  func.func @transform_2(%arg0: i32) -> (i32, i32) {
    %c0_i32 = arith.constant 0 : i32
    %c0_i32_0 = arith.constant 0 : i32
    %c0_i32_1 = arith.constant 0 : i32
    return %c0_i32, %c0_i32_0 : i32, i32
  }
  func.func @transform_3(%arg0: i32) -> (i32, i32) {
    %c0_i32 = arith.constant 0 : i32
    %c0_i32_0 = arith.constant 0 : i32
    %c0_i32_1 = arith.constant 0 : i32
    return %c0_i32, %c0_i32_0 : i32, i32
  }
  func.func @transform_4(%arg0: i32) -> (i32, i32) {
    %c0_i32 = arith.constant 0 : i32
    %c0_i32_0 = arith.constant 0 : i32
    %c0_i32_1 = arith.constant 0 : i32
    return %c0_i32, %c0_i32_0 : i32, i32
  }
  func.func @transform_5(%arg0: i32) -> (i32, i32) {
    %c0_i32 = arith.constant 0 : i32
    %c0_i32_0 = arith.constant 0 : i32
    %c0_i32_1 = arith.constant 0 : i32
    return %c0_i32, %c0_i32_0 : i32, i32
  }
  func.func @transform_6(%arg0: i32) -> (i32, i32) {
    %c0_i32 = arith.constant 0 : i32
    %c0_i32_0 = arith.constant 0 : i32
    return %arg0, %c0_i32 : i32, i32
  }
}

</mosaic_0001>

<llo_original>
// kernel: tpu_custom_call.1
$region0: #{tpu_custom_call.1}
  #allocation0 [shape = 'u32[]', space=smem, size = 0x4, offset = 0x4, fixed_abs, tag = 'smem constant byte address 0x4 - core index']
  #allocation1 [shape = 'u32[144,128]{1,0:T(1,128)}', space=vmem, size = 0x12000, scoped, tag = 'internal scratch']
  #allocation2 [shape = 'f32[1,1]{1,0:T(1,128)S(1)}', space=vmem, size = 0x200, scoped, tag = 'scoped memory for tpu_custom_call.1']
  %s0 = inlined_call_operand.vmem [shape: f32[2,8,24], index: 0, kind: input, shape index: {}]
  %s1 = inlined_call_operand.vmem [shape: f32[24,512], index: 1, kind: input, shape index: {}]
  %s2 = inlined_call_operand.hbm [shape: f32[128,512], index: 2, kind: input, shape index: {}]
  %s3 = inlined_call_operand.vmem [shape: f32[1,512], index: 3, kind: input, shape index: {}]
  %s4 = inlined_call_operand.vmem [shape: f32[128,1], index: 4, kind: input, shape index: {}]
  %s5 = inlined_call_operand.<no memory space> [shape: f32[1,1], index: 5, kind: input, shape index: {}]
  %s6 = inlined_call_operand.vmem [shape: f32[2,1], index: 6, kind: output, shape index: {}]
  %s7 = sld [smem:[#allocation0]]
  $region38: #{tpu_custom_call.1} parent=0
    _
  %s9 = ssub.s32 1, %s7
  %s10 = scalar_select 0, %s9, %s7
  %v11 = vstv %s5
  %12 = vst [vmem:[#allocation2] sm:$0x1] %v11
  $region1: #{tpu_custom_call.1} parent=0
    #allocation3 [shape = 'u8[262144]{0}', space=vmem, size = 0x40000, scoped, tag = 'input window, operand 2, single buffered']
    #allocation4 [shape = 's32[1]{0}', space=sflag, size = 0x4, scoped, tag = 'scoped memory for tpu_custom_call.1']
    %13 = vsyncpa [#allocation4], 0
    // Predicated region
    $region2: #{tpu_custom_call.1} parent=1 // pred_check
      _
    $region3: #{tpu_custom_call.1} parent=1 // pred_check_branch
      %15 = sbr.rel (0) target = $region5
    $region4: #{tpu_custom_call.1} parent=1 // pred_region
      _
    $region5: #{tpu_custom_call.1} parent=1 // pred_fallthru
      _
    // Predicated region
    $region6: #{tpu_custom_call.1} parent=1 // pred_check
      _
    $region7: #{tpu_custom_call.1} parent=1 // pred_check_branch
      %17 = sbr.rel (0) target = $region9
    $region8: #{tpu_custom_call.1} parent=1 // pred_region
      _
    $region9: #{tpu_custom_call.1} parent=1 // pred_fallthru
      _
    // Predicated region
    $region10: #{tpu_custom_call.1} parent=1 // pred_check
      _
    $region11: #{tpu_custom_call.1} parent=1 // pred_check_branch
      %19 = sbr.rel (0) target = $region13
    $region12: #{tpu_custom_call.1} parent=1 // pred_region
      %s21 = ssub.s32 8192, 8192
      %22 = vsyncadd [#allocation4], %s21
      %s23 = sshll.u32 [#allocation3], 4
      %s24 = int_to_ptr.vmem [resolvable:$true] %s23
      %29 = dma.hbm_to_vmem [thread:$0]  %s2, 8192, %s24, [#allocation4], 512, 512, 32
    $region13: #{tpu_custom_call.1} parent=1 // pred_fallthru
      _
    // Predicated region
    $region14: #{tpu_custom_call.1} parent=1 // pred_check
      _
    $region15: #{tpu_custom_call.1} parent=1 // pred_check_branch
      %31 = sbr.rel (0) target = $region17
    $region16: #{tpu_custom_call.1} parent=1 // pred_region
      _
    $region17: #{tpu_custom_call.1} parent=1 // pred_fallthru
      _
    // Predicated region
    $region18: #{tpu_custom_call.1} parent=1 // pred_check
      _
    $region19: #{tpu_custom_call.1} parent=1 // pred_check_branch
      %33 = sbr.rel (0) target = $region21
    $region20: #{tpu_custom_call.1} parent=1 // pred_region
      _
    $region21: #{tpu_custom_call.1} parent=1 // pred_fallthru
      _
    // Predicated region
    $region22: #{tpu_custom_call.1} parent=1 // pred_check
      _
    $region23: #{tpu_custom_call.1} parent=1 // pred_check_branch
      %35 = sbr.rel (0) target = $region25
    $region24: #{tpu_custom_call.1} parent=1 // pred_region
      _
    $region25: #{tpu_custom_call.1} parent=1 // pred_fallthru
      _
    // Predicated region
    $region26: #{tpu_custom_call.1} parent=1 // pred_check
      _
    $region27: #{tpu_custom_call.1} parent=1 // pred_check_branch
      %37 = sbr.rel (0) target = $region29
    $region28: #{tpu_custom_call.1} parent=1 // pred_region
      %38 = dma.done [#allocation4], 8192
    $region29: #{tpu_custom_call.1} parent=1 // pred_fallthru
      _
    %v39 = vld [vmem:[%s0] sm:$0xff]
    %v40 = vld [vmem:[%s0 + $0x8] sm:$0xff]
    %v41 = vld [vmem:[%s1] sm:$0xff]
    %v42 = vld [vmem:[%s1 + $0x8] sm:$0xff]
    %v43 = vld [vmem:[%s1 + $0x10] sm:$0xff]
    %v44 = vld [vmem:[%s1 + $0x18] sm:$0xff]
    %v45 = vld [vmem:[%s1 + $0x20] sm:$0xff]
    %v46 = vld [vmem:[%s1 + $0x28] sm:$0xff]
    %v47 = vld [vmem:[%s1 + $0x30] sm:$0xff]
    %v48 = vld [vmem:[%s1 + $0x38] sm:$0xff]
    %v49 = vld [vmem:[%s1 + $0x40] sm:$0xff]
    %v50 = vld [vmem:[%s1 + $0x48] sm:$0xff]
    %v51 = vld [vmem:[%s1 + $0x50] sm:$0xff]
    %v52 = vld [vmem:[%s1 + $0x58] sm:$0xff]
    %v53 = vld [vmem:[%s3] sm:$0xf]
    %v55 = vlaneseq
    %v56 = vshrl.u32 %v55, 7
    %v57 = vsub.s32 0, %v56
    %v58 = vrot.slane %v53, %v57
    %v59 = vlaneseq
    %v60 = vshrl.u32 %v59, 7
    %v61 = vsub.s32 1, %v60
    %v62 = vrot.slane %v53, %v61
    %v63 = vlaneseq
    %v64 = vshrl.u32 %v63, 7
    %v65 = vsub.s32 2, %v64
    %v66 = vrot.slane %v53, %v65
    %v67 = vlaneseq
    %v68 = vshrl.u32 %v67, 7
    %v69 = vsub.s32 3, %v68
    %v70 = vrot.slane %v53, %v69
    %vm75 = vcmask 195584
    %v77 = vsel %vm75, %v39, 0
    %v80 = vsel %vm75, %v40, 0
    %82 = vmatprep.subr.mxu0 %v42
    %83 = vmatpush1.msra.mxu0 %v41
    %84 = vmatprep.subr.mxu0 %v46
    %85 = vmatpush1.msra.mxu0 %v45
    %86 = vmatprep.subr.mxu0 %v50
    %87 = vmatpush1.msra.mxu0 %v49
    %88 = vmatprep.subr.mxu0 0.0
    %89 = vmatpush1.msra.mxu0 0.0
    %90 = vmatprep.subr.mxu0 0.0
    %91 = vmatpush1.msra.mxu0 0.0
    %92 = vmatprep.subr.mxu0 0.0
    %93 = vmatpush1.msra.mxu0 0.0
    %94 = vmatprep.subr.mxu0 0.0
    %95 = vmatpush1.msra.mxu0 0.0
    %96 = vmatprep.subr.mxu0 0.0
    %97 = vmatpush1.msra.mxu0 0.0
    %98 = vmatprep.subr.mxu0 0.0
    %99 = vmatpush1.msra.mxu0 0.0
    %100 = vmatprep.subr.mxu0 0.0
    %101 = vmatpush1.msra.mxu0 0.0
    %102 = vmatprep.subr.mxu0 0.0
    %103 = vmatpush1.msra.mxu0 0.0
    %104 = vmatprep.subr.mxu0 0.0
    %105 = vmatpush1.msra.mxu0 0.0
    %106 = vmatprep.subr.mxu0 0.0
    %107 = vmatpush1.msra.mxu0 0.0
    %108 = vmatprep.subr.mxu0 0.0
    %109 = vmatpush1.msra.mxu0 0.0
    %110 = vmatprep.subr.mxu0 0.0
    %111 = vmatpush1.msra.mxu0 0.0
    %112 = vmatprep.subr.mxu0 0.0
    %113 = vmatpush1.msra.mxu0 0.0
    %114 = vmatprep.subr.mxu0 0.0
    %115 = vmatpush1.msra.mxu0 0.0
    %116 = vmatprep.subr.mxu0 0.0
    %117 = vmatpush1.msra.mxu0 0.0
    %118 = vmatprep.subr.mxu0 0.0
    %119 = vmatpush1.msra.mxu0 0.0
    %120 = vmatprep.subr.mxu0 0.0
    %121 = vmatpush1.msra.mxu0 0.0
    %122 = vmatprep.subr.mxu0 0.0
    %123 = vmatpush1.msra.mxu0 0.0
    %124 = vmatprep.subr.mxu0 0.0
    %125 = vmatpush1.msra.mxu0 0.0
    %126 = vmatprep.subr.mxu0 0.0
    %127 = vmatpush1.msra.mxu0 0.0
    %128 = vmatprep.subr.mxu0 0.0
    %129 = vmatpush1.msra.mxu0 0.0
    %130 = vmatprep.subr.mxu0 0.0
    %131 = vmatpush1.msra.mxu0 0.0
    %132 = vmatprep.subr.mxu0 0.0
    %133 = vmatpush1.msra.mxu0 0.0
    %134 = vmatprep.subr.mxu0 0.0
    %135 = vmatpush1.msra.mxu0 0.0
    %136 = vmatprep.subr.mxu0 0.0
    %137 = vmatpush1.msra.mxu0 0.0
    %138 = vmatprep.subr.mxu0 0.0
    %139 = vmatpush1.msra.mxu0 0.0
    %140 = vmatprep.subr.mxu0 0.0
    %141 = vmatpush1.msra.mxu0 0.0
    %142 = vmatprep.subr.mxu0 0.0
    %143 = vmatpush1.msra.mxu0 0.0
    %144 = vmatprep.subr.mxu0 0.0
    %145 = vmatpush1.msra.mxu0 0.0
    %146 = vmatprep.mubr.f32.mxu0 0.0
    %147 = vmatmul.mubr.f32.gmra.mrb[0].mxu0 %v77
    %v148 = vpop.f32.mrb[0].mxu0
    %v149 = vadd.f32 %v58, %v148
    %v150 = vpop.f32.mrb[0].mxu0
    %v151 = vadd.f32 %v62, %v150
    %152 = vmatprep.mubr.f32.mxu0 0.0
    %153 = vmatmul.mubr.f32.gmra.mrb[0].mxu0 %v80
    %v154 = vpop.f32.mrb[0].mxu0
    %v155 = vadd.f32 %v58, %v154
    %v156 = vpop.f32.mrb[0].mxu0
    %v157 = vadd.f32 %v62, %v156
    %158 = vdwg.mxu0
    %159 = vmatprep.subr.mxu0 %v44
    %160 = vmatpush1.msra.mxu0 %v43
    %161 = vmatprep.subr.mxu0 %v48
    %162 = vmatpush1.msra.mxu0 %v47
    %163 = vmatprep.subr.mxu0 %v52
    %164 = vmatpush1.msra.mxu0 %v51
    %165 = vmatprep.subr.mxu0 0.0
    %166 = vmatpush1.msra.mxu0 0.0
    %167 = vmatprep.subr.mxu0 0.0
    %168 = vmatpush1.msra.mxu0 0.0
    %169 = vmatprep.subr.mxu0 0.0
    %170 = vmatpush1.msra.mxu0 0.0
    %171 = vmatprep.subr.mxu0 0.0
    %172 = vmatpush1.msra.mxu0 0.0
    %173 = vmatprep.subr.mxu0 0.0
    %174 = vmatpush1.msra.mxu0 0.0
    %175 = vmatprep.subr.mxu0 0.0
    %176 = vmatpush1.msra.mxu0 0.0
    %177 = vmatprep.subr.mxu0 0.0
    %178 = vmatpush1.msra.mxu0 0.0
    %179 = vmatprep.subr.mxu0 0.0
    %180 = vmatpush1.msra.mxu0 0.0
    %181 = vmatprep.subr.mxu0 0.0
    %182 = vmatpush1.msra.mxu0 0.0
    %183 = vmatprep.subr.mxu0 0.0
    %184 = vmatpush1.msra.mxu0 0.0
    %185 = vmatprep.subr.mxu0 0.0
    %186 = vmatpush1.msra.mxu0 0.0
    %187 = vmatprep.subr.mxu0 0.0
    %188 = vmatpush1.msra.mxu0 0.0
    %189 = vmatprep.subr.mxu0 0.0
    %190 = vmatpush1.msra.mxu0 0.0
    %191 = vmatprep.subr.mxu0 0.0
    %192 = vmatpush1.msra.mxu0 0.0
    %193 = vmatprep.subr.mxu0 0.0
    %194 = vmatpush1.msra.mxu0 0.0
    %195 = vmatprep.subr.mxu0 0.0
    %196 = vmatpush1.msra.mxu0 0.0
    %197 = vmatprep.subr.mxu0 0.0
    %198 = vmatpush1.msra.mxu0 0.0
    %199 = vmatprep.subr.mxu0 0.0
    %200 = vmatpush1.msra.mxu0 0.0
    %201 = vmatprep.subr.mxu0 0.0
    %202 = vmatpush1.msra.mxu0 0.0
    %203 = vmatprep.subr.mxu0 0.0
    %204 = vmatpush1.msra.mxu0 0.0
    %205 = vmatprep.subr.mxu0 0.0
    %206 = vmatpush1.msra.mxu0 0.0
    %207 = vmatprep.subr.mxu0 0.0
    %208 = vmatpush1.msra.mxu0 0.0
    %209 = vmatprep.subr.mxu0 0.0
    %210 = vmatpush1.msra.mxu0 0.0
    %211 = vmatprep.subr.mxu0 0.0
    %212 = vmatpush1.msra.mxu0 0.0
    %213 = vmatprep.subr.mxu0 0.0
    %214 = vmatpush1.msra.mxu0 0.0
    %215 = vmatprep.subr.mxu0 0.0
    %216 = vmatpush1.msra.mxu0 0.0
    %217 = vmatprep.subr.mxu0 0.0
    %218 = vmatpush1.msra.mxu0 0.0
    %219 = vmatprep.subr.mxu0 0.0
    %220 = vmatpush1.msra.mxu0 0.0
    %221 = vmatprep.subr.mxu0 0.0
    %222 = vmatpush1.msra.mxu0 0.0
    %223 = vmatprep.mubr.f32.mxu0 0.0
    %224 = vmatmul.mubr.f32.gmra.mrb[0].mxu0 %v77
    %v225 = vpop.f32.mrb[0].mxu0
    %v226 = vadd.f32 %v66, %v225
    %v227 = vpop.f32.mrb[0].mxu0
    %v228 = vadd.f32 %v70, %v227
    %229 = vmatprep.mubr.f32.mxu0 0.0
    %230 = vmatmul.mubr.f32.gmra.mrb[0].mxu0 %v80
    %v231 = vpop.f32.mrb[0].mxu0
    %v232 = vadd.f32 %v66, %v231
    %v233 = vpop.f32.mrb[0].mxu0
    %v234 = vadd.f32 %v70, %v233
    %235 = vdwg.mxu0
    %v236 = vld [vmem:[#allocation3] sm:$0xff]
    %v237 = vld [vmem:[#allocation3 + $0x8] sm:$0xff]
    %v238 = vld [vmem:[#allocation3 + $0x10] sm:$0xff]
    %v239 = vld [vmem:[#allocation3 + $0x18] sm:$0xff]
    %v240 = vld [vmem:[#allocation3 + $0x20] sm:$0xff]
    %v241 = vld [vmem:[#allocation3 + $0x28] sm:$0xff]
    %v242 = vld [vmem:[#allocation3 + $0x30] sm:$0xff]
    %v243 = vld [vmem:[#allocation3 + $0x38] sm:$0xff]
    %v244 = vld [vmem:[#allocation3 + $0x40] sm:$0xff]
    %v245 = vld [vmem:[#allocation3 + $0x48] sm:$0xff]
    %v246 = vld [vmem:[#allocation3 + $0x50] sm:$0xff]
    %v247 = vld [vmem:[#allocation3 + $0x58] sm:$0xff]
    %v248 = vld [vmem:[#allocation3 + $0x60] sm:$0xff]
    %v249 = vld [vmem:[#allocation3 + $0x68] sm:$0xff]
    %v250 = vld [vmem:[#allocation3 + $0x70] sm:$0xff]
    %v251 = vld [vmem:[#allocation3 + $0x78] sm:$0xff]
    %v252 = vld [vmem:[#allocation3 + $0x80] sm:$0xff]
    %v253 = vld [vmem:[#allocation3 + $0x88] sm:$0xff]
    %v254 = vld [vmem:[#allocation3 + $0x90] sm:$0xff]
    %v255 = vld [vmem:[#allocation3 + $0x98] sm:$0xff]
    %v256 = vld [vmem:[#allocation3 + $0xa0] sm:$0xff]
    %v257 = vld [vmem:[#allocation3 + $0xa8] sm:$0xff]
    %v258 = vld [vmem:[#allocation3 + $0xb0] sm:$0xff]
    %v259 = vld [vmem:[#allocation3 + $0xb8] sm:$0xff]
    %v260 = vld [vmem:[#allocation3 + $0xc0] sm:$0xff]
    %v261 = vld [vmem:[#allocation3 + $0xc8] sm:$0xff]
    %v262 = vld [vmem:[#allocation3 + $0xd0] sm:$0xff]
    %v263 = vld [vmem:[#allocation3 + $0xd8] sm:$0xff]
    %v264 = vld [vmem:[#allocation3 + $0xe0] sm:$0xff]
    %v265 = vld [vmem:[#allocation3 + $0xe8] sm:$0xff]
    %v266 = vld [vmem:[#allocation3 + $0xf0] sm:$0xff]
    %v267 = vld [vmem:[#allocation3 + $0xf8] sm:$0xff]
    %v268 = vld [vmem:[#allocation3 + $0x100] sm:$0xff]
    %v269 = vld [vmem:[#allocation3 + $0x108] sm:$0xff]
    %v270 = vld [vmem:[#allocation3 + $0x110] sm:$0xff]
    %v271 = vld [vmem:[#allocation3 + $0x118] sm:$0xff]
    %v272 = vld [vmem:[#allocation3 + $0x120] sm:$0xff]
    %v273 = vld [vmem:[#allocation3 + $0x128] sm:$0xff]
    %v274 = vld [vmem:[#allocation3 + $0x130] sm:$0xff]
    %v275 = vld [vmem:[#allocation3 + $0x138] sm:$0xff]
    %v276 = vld [vmem:[#allocation3 + $0x140] sm:$0xff]
    %v277 = vld [vmem:[#allocation3 + $0x148] sm:$0xff]
    %v278 = vld [vmem:[#allocation3 + $0x150] sm:$0xff]
    %v279 = vld [vmem:[#allocation3 + $0x158] sm:$0xff]
    %v280 = vld [vmem:[#allocation3 + $0x160] sm:$0xff]
    %v281 = vld [vmem:[#allocation3 + $0x168] sm:$0xff]
    %v282 = vld [vmem:[#allocation3 + $0x170] sm:$0xff]
    %v283 = vld [vmem:[#allocation3 + $0x178] sm:$0xff]
    %v284 = vld [vmem:[#allocation3 + $0x180] sm:$0xff]
    %v285 = vld [vmem:[#allocation3 + $0x188] sm:$0xff]
    %v286 = vld [vmem:[#allocation3 + $0x190] sm:$0xff]
    %v287 = vld [vmem:[#allocation3 + $0x198] sm:$0xff]
    %v288 = vld [vmem:[#allocation3 + $0x1a0] sm:$0xff]
    %v289 = vld [vmem:[#allocation3 + $0x1a8] sm:$0xff]
    %v290 = vld [vmem:[#allocation3 + $0x1b0] sm:$0xff]
    %v291 = vld [vmem:[#allocation3 + $0x1b8] sm:$0xff]
    %v292 = vld [vmem:[#allocation3 + $0x1c0] sm:$0xff]
    %v293 = vld [vmem:[#allocation3 + $0x1c8] sm:$0xff]
    %v294 = vld [vmem:[#allocation3 + $0x1d0] sm:$0xff]
    %v295 = vld [vmem:[#allocation3 + $0x1d8] sm:$0xff]
    %v296 = vld [vmem:[#allocation3 + $0x1e0] sm:$0xff]
    %v297 = vld [vmem:[#allocation3 + $0x1e8] sm:$0xff]
    %v298 = vld [vmem:[#allocation3 + $0x1f0] sm:$0xff]
    %v299 = vld [vmem:[#allocation3 + $0x1f8] sm:$0xff]
    %300 = vmatprep.subr.mxu0 %v237
    %301 = vmatpush1.msra.mxu0 %v236
    %302 = vmatprep.subr.mxu0 %v241
    %303 = vmatpush1.msra.mxu0 %v240
    %304 = vmatprep.subr.mxu0 %v245
    %305 = vmatpush1.msra.mxu0 %v244
    %306 = vmatprep.subr.mxu0 %v249
    %307 = vmatpush1.msra.mxu0 %v248
    %308 = vmatprep.subr.mxu0 %v253
    %309 = vmatpush1.msra.mxu0 %v252
    %310 = vmatprep.subr.mxu0 %v257
    %311 = vmatpush1.msra.mxu0 %v256
    %312 = vmatprep.subr.mxu0 %v261
    %313 = vmatpush1.msra.mxu0 %v260
    %314 = vmatprep.subr.mxu0 %v265
    %315 = vmatpush1.msra.mxu0 %v264
    %316 = vmatprep.subr.mxu0 %v269
    %317 = vmatpush1.msra.mxu0 %v268
    %318 = vmatprep.subr.mxu0 %v273
    %319 = vmatpush1.msra.mxu0 %v272
    %320 = vmatprep.subr.mxu0 %v277
    %321 = vmatpush1.msra.mxu0 %v276
    %322 = vmatprep.subr.mxu0 %v281
    %323 = vmatpush1.msra.mxu0 %v280
    %324 = vmatprep.subr.mxu0 %v285
    %325 = vmatpush1.msra.mxu0 %v284
    %326 = vmatprep.subr.mxu0 %v289
    %327 = vmatpush1.msra.mxu0 %v288
    %328 = vmatprep.subr.mxu0 %v293
    %329 = vmatpush1.msra.mxu0 %v292
    %330 = vmatprep.subr.mxu0 %v297
    %331 = vmatpush1.msra.mxu0 %v296
    %332 = vmatprep.subr.mxu0 0.0
    %333 = vmatpush1.msra.mxu0 0.0
    %334 = vmatprep.subr.mxu0 0.0
    %335 = vmatpush1.msra.mxu0 0.0
    %336 = vmatprep.subr.mxu0 0.0
    %337 = vmatpush1.msra.mxu0 0.0
    %338 = vmatprep.subr.mxu0 0.0
    %339 = vmatpush1.msra.mxu0 0.0
    %340 = vmatprep.subr.mxu0 0.0
    %341 = vmatpush1.msra.mxu0 0.0
    %342 = vmatprep.subr.mxu0 0.0
    %343 = vmatpush1.msra.mxu0 0.0
    %344 = vmatprep.subr.mxu0 0.0
    %345 = vmatpush1.msra.mxu0 0.0
    %346 = vmatprep.subr.mxu0 0.0
    %347 = vmatpush1.msra.mxu0 0.0
    %348 = vmatprep.subr.mxu0 0.0
    %349 = vmatpush1.msra.mxu0 0.0
    %350 = vmatprep.subr.mxu0 0.0
    %351 = vmatpush1.msra.mxu0 0.0
    %352 = vmatprep.subr.mxu0 0.0
    %353 = vmatpush1.msra.mxu0 0.0
    %354 = vmatprep.subr.mxu0 0.0
    %355 = vmatpush1.msra.mxu0 0.0
    %356 = vmatprep.subr.mxu0 0.0
    %357 = vmatpush1.msra.mxu0 0.0
    %358 = vmatprep.subr.mxu0 0.0
    %359 = vmatpush1.msra.mxu0 0.0
    %360 = vmatprep.subr.mxu0 0.0
    %361 = vmatpush1.msra.mxu0 0.0
    %362 = vmatprep.subr.mxu0 0.0
    %363 = vmatpush1.msra.mxu0 0.0
    %364 = vmatprep.mubr.f32.mxu0 0.0
    %365 = vmatmul.mubr.f32.gmra.mrb[0].mxu0 0.0
    %v366 = vpop.f32.mrb[0].mxu0
    %v367 = vadd.f32 0.0, %v366
    %v368 = vpop.f32.mrb[0].mxu0
    %v369 = vadd.f32 0.0, %v368
    %370 = vdwg.mxu0
    %371 = vmatprep.subr.mxu0 %v239
    %372 = vmatpush1.msra.mxu0 %v238
    %373 = vmatprep.subr.mxu0 %v243
    %374 = vmatpush1.msra.mxu0 %v242
    %375 = vmatprep.subr.mxu0 %v247
    %376 = vmatpush1.msra.mxu0 %v246
    %377 = vmatprep.subr.mxu0 %v251
    %378 = vmatpush1.msra.mxu0 %v250
    %379 = vmatprep.subr.mxu0 %v255
    %380 = vmatpush1.msra.mxu0 %v254
    %381 = vmatprep.subr.mxu0 %v259
    %382 = vmatpush1.msra.mxu0 %v258
    %383 = vmatprep.subr.mxu0 %v263
    %384 = vmatpush1.msra.mxu0 %v262
    %385 = vmatprep.subr.mxu0 %v267
    %386 = vmatpush1.msra.mxu0 %v266
    %387 = vmatprep.subr.mxu0 %v271
    %388 = vmatpush1.msra.mxu0 %v270
    %389 = vmatprep.subr.mxu0 %v275
    %390 = vmatpush1.msra.mxu0 %v274
    %391 = vmatprep.subr.mxu0 %v279
    %392 = vmatpush1.msra.mxu0 %v278
    %393 = vmatprep.subr.mxu0 %v283
    %394 = vmatpush1.msra.mxu0 %v282
    %395 = vmatprep.subr.mxu0 %v287
    %396 = vmatpush1.msra.mxu0 %v286
    %397 = vmatprep.subr.mxu0 %v291
    %398 = vmatpush1.msra.mxu0 %v290
    %399 = vmatprep.subr.mxu0 %v295
    %400 = vmatpush1.msra.mxu0 %v294
    %401 = vmatprep.subr.mxu0 %v299
    %402 = vmatpush1.msra.mxu0 %v298
    %403 = vmatprep.subr.mxu0 0.0
    %404 = vmatpush1.msra.mxu0 0.0
    %405 = vmatprep.subr.mxu0 0.0
    %406 = vmatpush1.msra.mxu0 0.0
    %407 = vmatprep.subr.mxu0 0.0
    %408 = vmatpush1.msra.mxu0 0.0
    %409 = vmatprep.subr.mxu0 0.0
    %410 = vmatpush1.msra.mxu0 0.0
    %411 = vmatprep.subr.mxu0 0.0
    %412 = vmatpush1.msra.mxu0 0.0
    %413 = vmatprep.subr.mxu0 0.0
    %414 = vmatpush1.msra.mxu0 0.0
    %415 = vmatprep.subr.mxu0 0.0
    %416 = vmatpush1.msra.mxu0 0.0
    %417 = vmatprep.subr.mxu0 0.0
    %418 = vmatpush1.msra.mxu0 0.0
    %419 = vmatprep.subr.mxu0 0.0
    %420 = vmatpush1.msra.mxu0 0.0
    %421 = vmatprep.subr.mxu0 0.0
    %422 = vmatpush1.msra.mxu0 0.0
    %423 = vmatprep.subr.mxu0 0.0
    %424 = vmatpush1.msra.mxu0 0.0
    %425 = vmatprep.subr.mxu0 0.0
    %426 = vmatpush1.msra.mxu0 0.0
    %427 = vmatprep.subr.mxu0 0.0
    %428 = vmatpush1.msra.mxu0 0.0
    %429 = vmatprep.subr.mxu0 0.0
    %430 = vmatpush1.msra.mxu0 0.0
    %431 = vmatprep.subr.mxu0 0.0
    %432 = vmatpush1.msra.mxu0 0.0
    %433 = vmatprep.subr.mxu0 0.0
    %434 = vmatpush1.msra.mxu0 0.0
    %435 = vmatprep.mubr.f32.mxu0 0.0
    %436 = vmatmul.mubr.f32.gmra.mrb[0].mxu0 0.0
    %v437 = vpop.f32.mrb[0].mxu0
    %v438 = vadd.f32 0.0, %v437
    %v439 = vpop.f32.mrb[0].mxu0
    %v440 = vadd.f32 0.0, %v439
    %441 = vdwg.mxu0
    %v446 = vrot.slane %v367, 1
    %v447 = vrot.slane %v369, 1
    %v448 = vrot.slane %v438, 1
    %v449 = vrot.slane %v440, 1
    %v458 = vadd.f32 %v149, %v367
    %v459 = vadd.f32 %v151, %v369
    %v460 = vadd.f32 %v226, %v438
    %v461 = vadd.f32 %v228, %v440
    %v462 = vadd.f32 %v155, %v446
    %v463 = vadd.f32 %v157, %v447
    %v464 = vadd.f32 %v232, %v448
    %v465 = vadd.f32 %v234, %v449
    %v466 = vxor.u32 %v458, 2147483648
    %v467 = vxor.u32 %v462, 2147483648
    %v468 = vmul.f32 %v466, 1.442695
    %v469 = vpow.pop %v468
    %v470 = vmul.f32 %v467, 1.442695
    %v471 = vpow.pop %v470
    %v472 = vadd.f32 %v469, 1.0
    %v473 = vadd.f32 %v471, 1.0
    %v474 = vrcp.pop %v472
    %v475 = vmul.f32 1.0, %v474
    %v476 = vrcp.pop %v473
    %v477 = vmul.f32 1.0, %v476
    %v478 = vxor.u32 %v459, 2147483648
    %v479 = vxor.u32 %v463, 2147483648
    %v480 = vmul.f32 %v478, 1.442695
    %v481 = vpow.pop %v480
    %v482 = vmul.f32 %v479, 1.442695
    %v483 = vpow.pop %v482
    %v484 = vadd.f32 %v481, 1.0
    %v485 = vadd.f32 %v483, 1.0
    %v486 = vrcp.pop %v484
    %v487 = vmul.f32 1.0, %v486
    %v488 = vrcp.pop %v485
    %v489 = vmul.f32 1.0, %v488
    %v490 = vtanh.pop %v460
    %v491 = vtanh.pop %v464
    %v492 = vxor.u32 %v461, 2147483648
    %v493 = vxor.u32 %v465, 2147483648
    %v494 = vmul.f32 %v492, 1.442695
    %v495 = vpow.pop %v494
    %v496 = vmul.f32 %v493, 1.442695
    %v497 = vpow.pop %v496
    %v498 = vadd.f32 %v495, 1.0
    %v499 = vadd.f32 %v497, 1.0
    %v500 = vrcp.pop %v498
    %v501 = vmul.f32 1.0, %v500
    %v502 = vrcp.pop %v499
    %v503 = vmul.f32 1.0, %v502
    %v504 = vmul.f32 %v487, 0.0
    %v505 = vmul.f32 %v489, 0.0
    %v506 = vmul.f32 %v475, %v490
    %v507 = vmul.f32 %v477, %v491
    %v508 = vadd.f32 %v504, %v506
    %v509 = vadd.f32 %v505, %v507
    %v510 = vtanh.pop %v508
    %v511 = vtanh.pop %v509
    %v512 = vmul.f32 %v501, %v510
    %v513 = vmul.f32 %v503, %v511
    %v516 = vrot.slane %v513, 7
    %vm517 = vcmask 1041409
    %v518 = vsel %vm517, %v516, %v512
    %520 = vmatprep.subr.mxu0 %v237
    %521 = vmatpush1.msra.mxu0 %v236
    %522 = vmatprep.subr.mxu0 %v241
    %523 = vmatpush1.msra.mxu0 %v240
    %524 = vmatprep.subr.mxu0 %v245
    %525 = vmatpush1.msra.mxu0 %v244
    %526 = vmatprep.subr.mxu0 %v249
    %527 = vmatpush1.msra.mxu0 %v248
    %528 = vmatprep.subr.mxu0 %v253
    %529 = vmatpush1.msra.mxu0 %v252
    %530 = vmatprep.subr.mxu0 %v257
    %531 = vmatpush1.msra.mxu0 %v256
    %532 = vmatprep.subr.mxu0 %v261
    %533 = vmatpush1.msra.mxu0 %v260
    %534 = vmatprep.subr.mxu0 %v265
    %535 = vmatpush1.msra.mxu0 %v264
    %536 = vmatprep.subr.mxu0 %v269
    %537 = vmatpush1.msra.mxu0 %v268
    %538 = vmatprep.subr.mxu0 %v273
    %539 = vmatpush1.msra.mxu0 %v272
    %540 = vmatprep.subr.mxu0 %v277
    %541 = vmatpush1.msra.mxu0 %v276
    %542 = vmatprep.subr.mxu0 %v281
    %543 = vmatpush1.msra.mxu0 %v280
    %544 = vmatprep.subr.mxu0 %v285
    %545 = vmatpush1.msra.mxu0 %v284
    %546 = vmatprep.subr.mxu0 %v289
    %547 = vmatpush1.msra.mxu0 %v288
    %548 = vmatprep.subr.mxu0 %v293
    %549 = vmatpush1.msra.mxu0 %v292
    %550 = vmatprep.subr.mxu0 %v297
    %551 = vmatpush1.msra.mxu0 %v296
    %552 = vmatprep.subr.mxu0 0.0
    %553 = vmatpush1.msra.mxu0 0.0
    %554 = vmatprep.subr.mxu0 0.0
    %555 = vmatpush1.msra.mxu0 0.0
    %556 = vmatprep.subr.mxu0 0.0
    %557 = vmatpush1.msra.mxu0 0.0
    %558 = vmatprep.subr.mxu0 0.0
    %559 = vmatpush1.msra.mxu0 0.0
    %560 = vmatprep.subr.mxu0 0.0
    %561 = vmatpush1.msra.mxu0 0.0
    %562 = vmatprep.subr.mxu0 0.0
    %563 = vmatpush1.msra.mxu0 0.0
    %564 = vmatprep.subr.mxu0 0.0
    %565 = vmatpush1.msra.mxu0 0.0
    %566 = vmatprep.subr.mxu0 0.0
    %567 = vmatpush1.msra.mxu0 0.0
    %568 = vmatprep.subr.mxu0 0.0
    %569 = vmatpush1.msra.mxu0 0.0
    %570 = vmatprep.subr.mxu0 0.0
    %571 = vmatpush1.msra.mxu0 0.0
    %572 = vmatprep.subr.mxu0 0.0
    %573 = vmatpush1.msra.mxu0 0.0
    %574 = vmatprep.subr.mxu0 0.0
    %575 = vmatpush1.msra.mxu0 0.0
    %576 = vmatprep.subr.mxu0 0.0
    %577 = vmatpush1.msra.mxu0 0.0
    %578 = vmatprep.subr.mxu0 0.0
    %579 = vmatpush1.msra.mxu0 0.0
    %580 = vmatprep.subr.mxu0 0.0
    %581 = vmatpush1.msra.mxu0 0.0
    %582 = vmatprep.subr.mxu0 0.0
    %583 = vmatpush1.msra.mxu0 0.0
    %584 = vmatprep.mubr.f32.mxu0 0.0
    %585 = vmatmul.mubr.f32.gmra.mrb[0].mxu0 %v518
    %v586 = vpop.f32.mrb[0].mxu0
    %v587 = vadd.f32 0.0, %v586
    %v588 = vpop.f32.mrb[0].mxu0
    %v589 = vadd.f32 0.0, %v588
    %590 = vdwg.mxu0
    %591 = vmatprep.subr.mxu0 %v239
    %592 = vmatpush1.msra.mxu0 %v238
    %593 = vmatprep.subr.mxu0 %v243
    %594 = vmatpush1.msra.mxu0 %v242
    %595 = vmatprep.subr.mxu0 %v247
    %596 = vmatpush1.msra.mxu0 %v246
    %597 = vmatprep.subr.mxu0 %v251
    %598 = vmatpush1.msra.mxu0 %v250
    %599 = vmatprep.subr.mxu0 %v255
    %600 = vmatpush1.msra.mxu0 %v254
    %601 = vmatprep.subr.mxu0 %v259
    %602 = vmatpush1.msra.mxu0 %v258
    %603 = vmatprep.subr.mxu0 %v263
    %604 = vmatpush1.msra.mxu0 %v262
    %605 = vmatprep.subr.mxu0 %v267
    %606 = vmatpush1.msra.mxu0 %v266
    %607 = vmatprep.subr.mxu0 %v271
    %608 = vmatpush1.msra.mxu0 %v270
    %609 = vmatprep.subr.mxu0 %v275
    %610 = vmatpush1.msra.mxu0 %v274
    %611 = vmatprep.subr.mxu0 %v279
    %612 = vmatpush1.msra.mxu0 %v278
    %613 = vmatprep.subr.mxu0 %v283
    %614 = vmatpush1.msra.mxu0 %v282
    %615 = vmatprep.subr.mxu0 %v287
    %616 = vmatpush1.msra.mxu0 %v286
    %617 = vmatprep.subr.mxu0 %v291
    %618 = vmatpush1.msra.mxu0 %v290
    %619 = vmatprep.subr.mxu0 %v295
    %620 = vmatpush1.msra.mxu0 %v294
    %621 = vmatprep.subr.mxu0 %v299
    %622 = vmatpush1.msra.mxu0 %v298
    %623 = vmatprep.subr.mxu0 0.0
    %624 = vmatpush1.msra.mxu0 0.0
    %625 = vmatprep.subr.mxu0 0.0
    %626 = vmatpush1.msra.mxu0 0.0
    %627 = vmatprep.subr.mxu0 0.0
    %628 = vmatpush1.msra.mxu0 0.0
    %629 = vmatprep.subr.mxu0 0.0
    %630 = vmatpush1.msra.mxu0 0.0
    %631 = vmatprep.subr.mxu0 0.0
    %632 = vmatpush1.msra.mxu0 0.0
    %633 = vmatprep.subr.mxu0 0.0
    %634 = vmatpush1.msra.mxu0 0.0
    %635 = vmatprep.subr.mxu0 0.0
    %636 = vmatpush1.msra.mxu0 0.0
    %637 = vmatprep.subr.mxu0 0.0
    %638 = vmatpush1.msra.mxu0 0.0
    %639 = vmatprep.subr.mxu0 0.0
    %640 = vmatpush1.msra.mxu0 0.0
    %641 = vmatprep.subr.mxu0 0.0
    %642 = vmatpush1.msra.mxu0 0.0
    %643 = vmatprep.subr.mxu0 0.0
    %644 = vmatpush1.msra.mxu0 0.0
    %645 = vmatprep.subr.mxu0 0.0
    %646 = vmatpush1.msra.mxu0 0.0
    %647 = vmatprep.subr.mxu0 0.0
    %648 = vmatpush1.msra.mxu0 0.0
    %649 = vmatprep.subr.mxu0 0.0
    %650 = vmatpush1.msra.mxu0 0.0
    %651 = vmatprep.subr.mxu0 0.0
    %652 = vmatpush1.msra.mxu0 0.0
    %653 = vmatprep.subr.mxu0 0.0
    %654 = vmatpush1.msra.mxu0 0.0
    %655 = vmatprep.mubr.f32.mxu0 0.0
    %656 = vmatmul.mubr.f32.gmra.mrb[0].mxu0 %v518
    %v657 = vpop.f32.mrb[0].mxu0
    %v658 = vadd.f32 0.0, %v657
    %v659 = vpop.f32.mrb[0].mxu0
    %v660 = vadd.f32 0.0, %v659
    %661 = vdwg.mxu0
    %v666 = vrot.slane %v587, 7
    %v667 = vrot.slane %v589, 7
    %v668 = vrot.slane %v658, 7
    %v669 = vrot.slane %v660, 7
    %v678 = vadd.f32 %v149, %v666
    %v679 = vadd.f32 %v151, %v667
    %v680 = vadd.f32 %v226, %v668
    %v681 = vadd.f32 %v228, %v669
    %v682 = vadd.f32 %v155, %v587
    %v683 = vadd.f32 %v157, %v589
    %v684 = vadd.f32 %v232, %v658
    %v685 = vadd.f32 %v234, %v660
    %v686 = vxor.u32 %v678, 2147483648
    %v687 = vxor.u32 %v682, 2147483648
    %v688 = vmul.f32 %v686, 1.442695
    %v689 = vpow.pop %v688
    %v690 = vmul.f32 %v687, 1.442695
    %v691 = vpow.pop %v690
    %v692 = vadd.f32 %v689, 1.0
    %v693 = vadd.f32 %v691, 1.0
    %v694 = vrcp.pop %v692
    %v695 = vmul.f32 1.0, %v694
    %v696 = vrcp.pop %v693
    %v697 = vmul.f32 1.0, %v696
    %v698 = vxor.u32 %v679, 2147483648
    %v699 = vxor.u32 %v683, 2147483648
    %v700 = vmul.f32 %v698, 1.442695
    %v701 = vpow.pop %v700
    %v702 = vmul.f32 %v699, 1.442695
    %v703 = vpow.pop %v702
    %v704 = vadd.f32 %v701, 1.0
    %v705 = vadd.f32 %v703, 1.0
    %v706 = vrcp.pop %v704
    %v707 = vmul.f32 1.0, %v706
    %v708 = vrcp.pop %v705
    %v709 = vmul.f32 1.0, %v708
    %v710 = vtanh.pop %v680
    %v711 = vtanh.pop %v684
    %v712 = vxor.u32 %v681, 2147483648
    %v713 = vxor.u32 %v685, 2147483648
    %v714 = vmul.f32 %v712, 1.442695
    %v715 = vpow.pop %v714
    %v716 = vmul.f32 %v713, 1.442695
    %v717 = vpow.pop %v716
    %v718 = vadd.f32 %v715, 1.0
    %v719 = vadd.f32 %v717, 1.0
    %v720 = vrcp.pop %v718
    %v721 = vmul.f32 1.0, %v720
    %v722 = vrcp.pop %v719
    %v723 = vmul.f32 1.0, %v722
    %v726 = vrot.slane %v508, 7
    %v727 = vrot.slane %v509, 7
    %v730 = vmul.f32 %v707, %v726
    %v731 = vmul.f32 %v709, %v727
    %v732 = vmul.f32 %v695, %v710
    %v733 = vmul.f32 %v697, %v711
    %v734 = vadd.f32 %v730, %v732
    %v735 = vadd.f32 %v731, %v733
    %v736 = vtanh.pop %v734
    %v737 = vtanh.pop %v735
    %v738 = vmul.f32 %v721, %v736
    %v739 = vmul.f32 %v723, %v737
    %v742 = vrot.slane %v738, 1
    %v743 = vsel %vm517, %v739, %v742
    %745 = vmatprep.subr.mxu0 %v237
    %746 = vmatpush1.msra.mxu0 %v236
    %747 = vmatprep.subr.mxu0 %v241
    %748 = vmatpush1.msra.mxu0 %v240
    %749 = vmatprep.subr.mxu0 %v245
    %750 = vmatpush1.msra.mxu0 %v244
    %751 = vmatprep.subr.mxu0 %v249
    %752 = vmatpush1.msra.mxu0 %v248
    %753 = vmatprep.subr.mxu0 %v253
    %754 = vmatpush1.msra.mxu0 %v252
    %755 = vmatprep.subr.mxu0 %v257
    %756 = vmatpush1.msra.mxu0 %v256
    %757 = vmatprep.subr.mxu0 %v261
    %758 = vmatpush1.msra.mxu0 %v260
    %759 = vmatprep.subr.mxu0 %v265
    %760 = vmatpush1.msra.mxu0 %v264
    %761 = vmatprep.subr.mxu0 %v269
    %762 = vmatpush1.msra.mxu0 %v268
    %763 = vmatprep.subr.mxu0 %v273
    %764 = vmatpush1.msra.mxu0 %v272
    %765 = vmatprep.subr.mxu0 %v277
    %766 = vmatpush1.msra.mxu0 %v276
    %767 = vmatprep.subr.mxu0 %v281
    %768 = vmatpush1.msra.mxu0 %v280
    %769 = vmatprep.subr.mxu0 %v285
    %770 = vmatpush1.msra.mxu0 %v284
    %771 = vmatprep.subr.mxu0 %v289
    %772 = vmatpush1.msra.mxu0 %v288
    %773 = vmatprep.subr.mxu0 %v293
    %774 = vmatpush1.msra.mxu0 %v292
    %775 = vmatprep.subr.mxu0 %v297
    %776 = vmatpush1.msra.mxu0 %v296
    %777 = vmatprep.subr.mxu0 0.0
    %778 = vmatpush1.msra.mxu0 0.0
    %779 = vmatprep.subr.mxu0 0.0
    %780 = vmatpush1.msra.mxu0 0.0
    %781 = vmatprep.subr.mxu0 0.0
    %782 = vmatpush1.msra.mxu0 0.0
    %783 = vmatprep.subr.mxu0 0.0
    %784 = vmatpush1.msra.mxu0 0.0
    %785 = vmatprep.subr.mxu0 0.0
    %786 = vmatpush1.msra.mxu0 0.0
    %787 = vmatprep.subr.mxu0 0.0
    %788 = vmatpush1.msra.mxu0 0.0
    %789 = vmatprep.subr.mxu0 0.0
    %790 = vmatpush1.msra.mxu0 0.0
    %791 = vmatprep.subr.mxu0 0.0
    %792 = vmatpush1.msra.mxu0 0.0
    %793 = vmatprep.subr.mxu0 0.0
    %794 = vmatpush1.msra.mxu0 0.0
    %795 = vmatprep.subr.mxu0 0.0
    %796 = vmatpush1.msra.mxu0 0.0
    %797 = vmatprep.subr.mxu0 0.0
    %798 = vmatpush1.msra.mxu0 0.0
    %799 = vmatprep.subr.mxu0 0.0
    %800 = vmatpush1.msra.mxu0 0.0
    %801 = vmatprep.subr.mxu0 0.0
    %802 = vmatpush1.msra.mxu0 0.0
    %803 = vmatprep.subr.mxu0 0.0
    %804 = vmatpush1.msra.mxu0 0.0
    %805 = vmatprep.subr.mxu0 0.0
    %806 = vmatpush1.msra.mxu0 0.0
    %807 = vmatprep.subr.mxu0 0.0
    %808 = vmatpush1.msra.mxu0 0.0
    %809 = vmatprep.mubr.f32.mxu0 0.0
    %810 = vmatmul.mubr.f32.gmra.mrb[0].mxu0 %v743
    %v811 = vpop.f32.mrb[0].mxu0
    %v812 = vadd.f32 0.0, %v811
    %v813 = vpop.f32.mrb[0].mxu0
    %v814 = vadd.f32 0.0, %v813
    %815 = vdwg.mxu0
    %816 = vmatprep.subr.mxu0 %v239
    %817 = vmatpush1.msra.mxu0 %v238
    %818 = vmatprep.subr.mxu0 %v243
    %819 = vmatpush1.msra.mxu0 %v242
    %820 = vmatprep.subr.mxu0 %v247
    %821 = vmatpush1.msra.mxu0 %v246
    %822 = vmatprep.subr.mxu0 %v251
    %823 = vmatpush1.msra.mxu0 %v250
    %824 = vmatprep.subr.mxu0 %v255
    %825 = vmatpush1.msra.mxu0 %v254
    %826 = vmatprep.subr.mxu0 %v259
    %827 = vmatpush1.msra.mxu0 %v258
    %828 = vmatprep.subr.mxu0 %v263
    %829 = vmatpush1.msra.mxu0 %v262
    %830 = vmatprep.subr.mxu0 %v267
    %831 = vmatpush1.msra.mxu0 %v266
    %832 = vmatprep.subr.mxu0 %v271
    %833 = vmatpush1.msra.mxu0 %v270
    %834 = vmatprep.subr.mxu0 %v275
    %835 = vmatpush1.msra.mxu0 %v274
    %836 = vmatprep.subr.mxu0 %v279
    %837 = vmatpush1.msra.mxu0 %v278
    %838 = vmatprep.subr.mxu0 %v283
    %839 = vmatpush1.msra.mxu0 %v282
    %840 = vmatprep.subr.mxu0 %v287
    %841 = vmatpush1.msra.mxu0 %v286
    %842 = vmatprep.subr.mxu0 %v291
    %843 = vmatpush1.msra.mxu0 %v290
    %844 = vmatprep.subr.mxu0 %v295
    %845 = vmatpush1.msra.mxu0 %v294
    %846 = vmatprep.subr.mxu0 %v299
    %847 = vmatpush1.msra.mxu0 %v298
    %848 = vmatprep.subr.mxu0 0.0
    %849 = vmatpush1.msra.mxu0 0.0
    %850 = vmatprep.subr.mxu0 0.0
    %851 = vmatpush1.msra.mxu0 0.0
    %852 = vmatprep.subr.mxu0 0.0
    %853 = vmatpush1.msra.mxu0 0.0
    %854 = vmatprep.subr.mxu0 0.0
    %855 = vmatpush1.msra.mxu0 0.0
    %856 = vmatprep.subr.mxu0 0.0
    %857 = vmatpush1.msra.mxu0 0.0
    %858 = vmatprep.subr.mxu0 0.0
    %859 = vmatpush1.msra.mxu0 0.0
    %860 = vmatprep.subr.mxu0 0.0
    %861 = vmatpush1.msra.mxu0 0.0
    %862 = vmatprep.subr.mxu0 0.0
    %863 = vmatpush1.msra.mxu0 0.0
    %864 = vmatprep.subr.mxu0 0.0
    %865 = vmatpush1.msra.mxu0 0.0
    %866 = vmatprep.subr.mxu0 0.0
    %867 = vmatpush1.msra.mxu0 0.0
    %868 = vmatprep.subr.mxu0 0.0
    %869 = vmatpush1.msra.mxu0 0.0
    %870 = vmatprep.subr.mxu0 0.0
    %871 = vmatpush1.msra.mxu0 0.0
    %872 = vmatprep.subr.mxu0 0.0
    %873 = vmatpush1.msra.mxu0 0.0
    %874 = vmatprep.subr.mxu0 0.0
    %875 = vmatpush1.msra.mxu0 0.0
    %876 = vmatprep.subr.mxu0 0.0
    %877 = vmatpush1.msra.mxu0 0.0
    %878 = vmatprep.subr.mxu0 0.0
    %879 = vmatpush1.msra.mxu0 0.0
    %880 = vmatprep.mubr.f32.mxu0 0.0
    %881 = vmatmul.mubr.f32.gmra.mrb[0].mxu0 %v743
    %v882 = vpop.f32.mrb[0].mxu0
    %v883 = vadd.f32 0.0, %v882
    %v884 = vpop.f32.mrb[0].mxu0
    %v885 = vadd.f32 0.0, %v884
    %886 = vdwg.mxu0
    %v891 = vrot.slane %v812, 6
    %v892 = vrot.slane %v814, 6
    %v893 = vrot.slane %v883, 6
    %v894 = vrot.slane %v885, 6
    %v895 = vrot.slane %v812, 7
    %v896 = vrot.slane %v814, 7
    %v897 = vrot.slane %v883, 7
    %v898 = vrot.slane %v885, 7
    %v907 = vadd.f32 %v149, %v891
    %v908 = vadd.f32 %v151, %v892
    %v909 = vadd.f32 %v226, %v893
    %v910 = vadd.f32 %v228, %v894
    %v911 = vadd.f32 %v155, %v895
    %v912 = vadd.f32 %v157, %v896
    %v913 = vadd.f32 %v232, %v897
    %v914 = vadd.f32 %v234, %v898
    %v915 = vxor.u32 %v907, 2147483648
    %v916 = vxor.u32 %v911, 2147483648
    %v917 = vmul.f32 %v915, 1.442695
    %v918 = vpow.pop %v917
    %v919 = vmul.f32 %v916, 1.442695
    %v920 = vpow.pop %v919
    %v921 = vadd.f32 %v918, 1.0
    %v922 = vadd.f32 %v920, 1.0
    %v923 = vrcp.pop %v921
    %v924 = vmul.f32 1.0, %v923
    %v925 = vrcp.pop %v922
    %v926 = vmul.f32 1.0, %v925
    %v927 = vxor.u32 %v908, 2147483648
    %v928 = vxor.u32 %v912, 2147483648
    %v929 = vmul.f32 %v927, 1.442695
    %v930 = vpow.pop %v929
    %v931 = vmul.f32 %v928, 1.442695
    %v932 = vpow.pop %v931
    %v933 = vadd.f32 %v930, 1.0
    %v934 = vadd.f32 %v932, 1.0
    %v935 = vrcp.pop %v933
    %v936 = vmul.f32 1.0, %v935
    %v937 = vrcp.pop %v934
    %v938 = vmul.f32 1.0, %v937
    %v939 = vtanh.pop %v909
    %v940 = vtanh.pop %v913
    %v941 = vxor.u32 %v910, 2147483648
    %v942 = vxor.u32 %v914, 2147483648
    %v943 = vmul.f32 %v941, 1.442695
    %v944 = vpow.pop %v943
    %v945 = vmul.f32 %v942, 1.442695
    %v946 = vpow.pop %v945
    %v947 = vadd.f32 %v944, 1.0
    %v948 = vadd.f32 %v946, 1.0
    %v949 = vrcp.pop %v947
    %v950 = vmul.f32 1.0, %v949
    %v951 = vrcp.pop %v948
    %v952 = vmul.f32 1.0, %v951
    %v955 = vrot.slane %v734, 7
    %v956 = vrot.slane %v735, 7
    %v959 = vmul.f32 %v936, %v955
    %v960 = vmul.f32 %v938, %v956
    %v961 = vmul.f32 %v924, %v939
    %v962 = vmul.f32 %v926, %v940
    %v963 = vadd.f32 %v959, %v961
    %v964 = vadd.f32 %v960, %v962
    %v965 = vtanh.pop %v963
    %v966 = vtanh.pop %v964
    %v967 = vmul.f32 %v950, %v965
    %v968 = vmul.f32 %v952, %v966
    %v971 = vrot.slane %v967, 2
    %v972 = vrot.slane %v968, 1
    %v973 = vsel %vm517, %v972, %v971
    %975 = vmatprep.subr.mxu0 %v237
    %976 = vmatpush1.msra.mxu0 %v236
    %977 = vmatprep.subr.mxu0 %v241
    %978 = vmatpush1.msra.mxu0 %v240
    %979 = vmatprep.subr.mxu0 %v245
    %980 = vmatpush1.msra.mxu0 %v244
    %981 = vmatprep.subr.mxu0 %v249
    %982 = vmatpush1.msra.mxu0 %v248
    %983 = vmatprep.subr.mxu0 %v253
    %984 = vmatpush1.msra.mxu0 %v252
    %985 = vmatprep.subr.mxu0 %v257
    %986 = vmatpush1.msra.mxu0 %v256
    %987 = vmatprep.subr.mxu0 %v261
    %988 = vmatpush1.msra.mxu0 %v260
    %989 = vmatprep.subr.mxu0 %v265
    %990 = vmatpush1.msra.mxu0 %v264
    %991 = vmatprep.subr.mxu0 %v269
    %992 = vmatpush1.msra.mxu0 %v268
    %993 = vmatprep.subr.mxu0 %v273
    %994 = vmatpush1.msra.mxu0 %v272
    %995 = vmatprep.subr.mxu0 %v277
    %996 = vmatpush1.msra.mxu0 %v276
    %997 = vmatprep.subr.mxu0 %v281
    %998 = vmatpush1.msra.mxu0 %v280
    %999 = vmatprep.subr.mxu0 %v285
    %1000 = vmatpush1.msra.mxu0 %v284
    %1001 = vmatprep.subr.mxu0 %v289
    %1002 = vmatpush1.msra.mxu0 %v288
    %1003 = vmatprep.subr.mxu0 %v293
    %1004 = vmatpush1.msra.mxu0 %v292
    %1005 = vmatprep.subr.mxu0 %v297
    %1006 = vmatpush1.msra.mxu0 %v296
    %1007 = vmatprep.subr.mxu0 0.0
    %1008 = vmatpush1.msra.mxu0 0.0
    %1009 = vmatprep.subr.mxu0 0.0
    %1010 = vmatpush1.msra.mxu0 0.0
    %1011 = vmatprep.subr.mxu0 0.0
    %1012 = vmatpush1.msra.mxu0 0.0
    %1013 = vmatprep.subr.mxu0 0.0
    %1014 = vmatpush1.msra.mxu0 0.0
    %1015 = vmatprep.subr.mxu0 0.0
    %1016 = vmatpush1.msra.mxu0 0.0
    %1017 = vmatprep.subr.mxu0 0.0
    %1018 = vmatpush1.msra.mxu0 0.0
    %1019 = vmatprep.subr.mxu0 0.0
    %1020 = vmatpush1.msra.mxu0 0.0
    %1021 = vmatprep.subr.mxu0 0.0
    %1022 = vmatpush1.msra.mxu0 0.0
    %1023 = vmatprep.subr.mxu0 0.0
    %1024 = vmatpush1.msra.mxu0 0.0
    %1025 = vmatprep.subr.mxu0 0.0
    %1026 = vmatpush1.msra.mxu0 0.0
    %1027 = vmatprep.subr.mxu0 0.0
    %1028 = vmatpush1.msra.mxu0 0.0
    %1029 = vmatprep.subr.mxu0 0.0
    %1030 = vmatpush1.msra.mxu0 0.0
    %1031 = vmatprep.subr.mxu0 0.0
    %1032 = vmatpush1.msra.mxu0 0.0
    %1033 = vmatprep.subr.mxu0 0.0
    %1034 = vmatpush1.msra.mxu0 0.0
    %1035 = vmatprep.subr.mxu0 0.0
    %1036 = vmatpush1.msra.mxu0 0.0
    %1037 = vmatprep.subr.mxu0 0.0
    %1038 = vmatpush1.msra.mxu0 0.0
    %1039 = vmatprep.mubr.f32.mxu0 0.0
    %1040 = vmatmul.mubr.f32.gmra.mrb[0].mxu0 %v973
    %v1041 = vpop.f32.mrb[0].mxu0
    %v1042 = vadd.f32 0.0, %v1041
    %v1043 = vpop.f32.mrb[0].mxu0
    %v1044 = vadd.f32 0.0, %v1043
    %1045 = vdwg.mxu0
    %1046 = vmatprep.subr.mxu0 %v239
    %1047 = vmatpush1.msra.mxu0 %v238
    %1048 = vmatprep.subr.mxu0 %v243
    %1049 = vmatpush1.msra.mxu0 %v242
    %1050 = vmatprep.subr.mxu0 %v247
    %1051 = vmatpush1.msra.mxu0 %v246
    %1052 = vmatprep.subr.mxu0 %v251
    %1053 = vmatpush1.msra.mxu0 %v250
    %1054 = vmatprep.subr.mxu0 %v255
    %1055 = vmatpush1.msra.mxu0 %v254
    %1056 = vmatprep.subr.mxu0 %v259
    %1057 = vmatpush1.msra.mxu0 %v258
    %1058 = vmatprep.subr.mxu0 %v263
    %1059 = vmatpush1.msra.mxu0 %v262
    %1060 = vmatprep.subr.mxu0 %v267
    %1061 = vmatpush1.msra.mxu0 %v266
    %1062 = vmatprep.subr.mxu0 %v271
    %1063 = vmatpush1.msra.mxu0 %v270
    %1064 = vmatprep.subr.mxu0 %v275
    %1065 = vmatpush1.msra.mxu0 %v274
    %1066 = vmatprep.subr.mxu0 %v279
    %1067 = vmatpush1.msra.mxu0 %v278
    %1068 = vmatprep.subr.mxu0 %v283
    %1069 = vmatpush1.msra.mxu0 %v282
    %1070 = vmatprep.subr.mxu0 %v287
    %1071 = vmatpush1.msra.mxu0 %v286
    %1072 = vmatprep.subr.mxu0 %v291
    %1073 = vmatpush1.msra.mxu0 %v290
    %1074 = vmatprep.subr.mxu0 %v295
    %1075 = vmatpush1.msra.mxu0 %v294
    %1076 = vmatprep.subr.mxu0 %v299
    %1077 = vmatpush1.msra.mxu0 %v298
    %1078 = vmatprep.subr.mxu0 0.0
    %1079 = vmatpush1.msra.mxu0 0.0
    %1080 = vmatprep.subr.mxu0 0.0
    %1081 = vmatpush1.msra.mxu0 0.0
    %1082 = vmatprep.subr.mxu0 0.0
    %1083 = vmatpush1.msra.mxu0 0.0
    %1084 = vmatprep.subr.mxu0 0.0
    %1085 = vmatpush1.msra.mxu0 0.0
    %1086 = vmatprep.subr.mxu0 0.0
    %1087 = vmatpush1.msra.mxu0 0.0
    %1088 = vmatprep.subr.mxu0 0.0
    %1089 = vmatpush1.msra.mxu0 0.0
    %1090 = vmatprep.subr.mxu0 0.0
    %1091 = vmatpush1.msra.mxu0 0.0
    %1092 = vmatprep.subr.mxu0 0.0
    %1093 = vmatpush1.msra.mxu0 0.0
    %1094 = vmatprep.subr.mxu0 0.0
    %1095 = vmatpush1.msra.mxu0 0.0
    %1096 = vmatprep.subr.mxu0 0.0
    %1097 = vmatpush1.msra.mxu0 0.0
    %1098 = vmatprep.subr.mxu0 0.0
    %1099 = vmatpush1.msra.mxu0 0.0
    %1100 = vmatprep.subr.mxu0 0.0
    %1101 = vmatpush1.msra.mxu0 0.0
    %1102 = vmatprep.subr.mxu0 0.0
    %1103 = vmatpush1.msra.mxu0 0.0
    %1104 = vmatprep.subr.mxu0 0.0
    %1105 = vmatpush1.msra.mxu0 0.0
    %1106 = vmatprep.subr.mxu0 0.0
    %1107 = vmatpush1.msra.mxu0 0.0
    %1108 = vmatprep.subr.mxu0 0.0
    %1109 = vmatpush1.msra.mxu0 0.0
    %1110 = vmatprep.mubr.f32.mxu0 0.0
    %1111 = vmatmul.mubr.f32.gmra.mrb[0].mxu0 %v973
    %v1112 = vpop.f32.mrb[0].mxu0
    %v1113 = vadd.f32 0.0, %v1112
    %v1114 = vpop.f32.mrb[0].mxu0
    %v1115 = vadd.f32 0.0, %v1114
    %1116 = vdwg.mxu0
    %v1121 = vrot.slane %v1042, 5
    %v1122 = vrot.slane %v1044, 5
    %v1123 = vrot.slane %v1113, 5
    %v1124 = vrot.slane %v1115, 5
    %v1125 = vrot.slane %v1042, 6
    %v1126 = vrot.slane %v1044, 6
    %v1127 = vrot.slane %v1113, 6
    %v1128 = vrot.slane %v1115, 6
    %v1137 = vadd.f32 %v149, %v1121
    %v1138 = vadd.f32 %v151, %v1122
    %v1139 = vadd.f32 %v226, %v1123
    %v1140 = vadd.f32 %v228, %v1124
    %v1141 = vadd.f32 %v155, %v1125
    %v1142 = vadd.f32 %v157, %v1126
    %v1143 = vadd.f32 %v232, %v1127
    %v1144 = vadd.f32 %v234, %v1128
    %v1145 = vxor.u32 %v1137, 2147483648
    %v1146 = vxor.u32 %v1141, 2147483648
    %v1147 = vmul.f32 %v1145, 1.442695
    %v1148 = vpow.pop %v1147
    %v1149 = vmul.f32 %v1146, 1.442695
    %v1150 = vpow.pop %v1149
    %v1151 = vadd.f32 %v1148, 1.0
    %v1152 = vadd.f32 %v1150, 1.0
    %v1153 = vrcp.pop %v1151
    %v1154 = vmul.f32 1.0, %v1153
    %v1155 = vrcp.pop %v1152
    %v1156 = vmul.f32 1.0, %v1155
    %v1157 = vxor.u32 %v1138, 2147483648
    %v1158 = vxor.u32 %v1142, 2147483648
    %v1159 = vmul.f32 %v1157, 1.442695
    %v1160 = vpow.pop %v1159
    %v1161 = vmul.f32 %v1158, 1.442695
    %v1162 = vpow.pop %v1161
    %v1163 = vadd.f32 %v1160, 1.0
    %v1164 = vadd.f32 %v1162, 1.0
    %v1165 = vrcp.pop %v1163
    %v1166 = vmul.f32 1.0, %v1165
    %v1167 = vrcp.pop %v1164
    %v1168 = vmul.f32 1.0, %v1167
    %v1169 = vtanh.pop %v1139
    %v1170 = vtanh.pop %v1143
    %v1171 = vxor.u32 %v1140, 2147483648
    %v1172 = vxor.u32 %v1144, 2147483648
    %v1173 = vmul.f32 %v1171, 1.442695
    %v1174 = vpow.pop %v1173
    %v1175 = vmul.f32 %v1172, 1.442695
    %v1176 = vpow.pop %v1175
    %v1177 = vadd.f32 %v1174, 1.0
    %v1178 = vadd.f32 %v1176, 1.0
    %v1179 = vrcp.pop %v1177
    %v1180 = vmul.f32 1.0, %v1179
    %v1181 = vrcp.pop %v1178
    %v1182 = vmul.f32 1.0, %v1181
    %v1185 = vrot.slane %v963, 7
    %v1186 = vrot.slane %v964, 7
    %v1189 = vmul.f32 %v1166, %v1185
    %v1190 = vmul.f32 %v1168, %v1186
    %v1191 = vmul.f32 %v1154, %v1169
    %v1192 = vmul.f32 %v1156, %v1170
    %v1193 = vadd.f32 %v1189, %v1191
    %v1194 = vadd.f32 %v1190, %v1192
    %v1195 = vtanh.pop %v1193
    %v1196 = vtanh.pop %v1194
    %v1197 = vmul.f32 %v1180, %v1195
    %v1198 = vmul.f32 %v1182, %v1196
    %v1201 = vrot.slane %v1197, 3
    %v1202 = vrot.slane %v1198, 2
    %v1203 = vsel %vm517, %v1202, %v1201
    %1205 = vmatprep.subr.mxu0 %v237
    %1206 = vmatpush1.msra.mxu0 %v236
    %1207 = vmatprep.subr.mxu0 %v241
    %1208 = vmatpush1.msra.mxu0 %v240
    %1209 = vmatprep.subr.mxu0 %v245
    %1210 = vmatpush1.msra.mxu0 %v244
    %1211 = vmatprep.subr.mxu0 %v249
    %1212 = vmatpush1.msra.mxu0 %v248
    %1213 = vmatprep.subr.mxu0 %v253
    %1214 = vmatpush1.msra.mxu0 %v252
    %1215 = vmatprep.subr.mxu0 %v257
    %1216 = vmatpush1.msra.mxu0 %v256
    %1217 = vmatprep.subr.mxu0 %v261
    %1218 = vmatpush1.msra.mxu0 %v260
    %1219 = vmatprep.subr.mxu0 %v265
    %1220 = vmatpush1.msra.mxu0 %v264
    %1221 = vmatprep.subr.mxu0 %v269
    %1222 = vmatpush1.msra.mxu0 %v268
    %1223 = vmatprep.subr.mxu0 %v273
    %1224 = vmatpush1.msra.mxu0 %v272
    %1225 = vmatprep.subr.mxu0 %v277
    %1226 = vmatpush1.msra.mxu0 %v276
    %1227 = vmatprep.subr.mxu0 %v281
    %1228 = vmatpush1.msra.mxu0 %v280
    %1229 = vmatprep.subr.mxu0 %v285
    %1230 = vmatpush1.msra.mxu0 %v284
    %1231 = vmatprep.subr.mxu0 %v289
    %1232 = vmatpush1.msra.mxu0 %v288
    %1233 = vmatprep.subr.mxu0 %v293
    %1234 = vmatpush1.msra.mxu0 %v292
    %1235 = vmatprep.subr.mxu0 %v297
    %1236 = vmatpush1.msra.mxu0 %v296
    %1237 = vmatprep.subr.mxu0 0.0
    %1238 = vmatpush1.msra.mxu0 0.0
    %1239 = vmatprep.subr.mxu0 0.0
    %1240 = vmatpush1.msra.mxu0 0.0
    %1241 = vmatprep.subr.mxu0 0.0
    %1242 = vmatpush1.msra.mxu0 0.0
    %1243 = vmatprep.subr.mxu0 0.0
    %1244 = vmatpush1.msra.mxu0 0.0
    %1245 = vmatprep.subr.mxu0 0.0
    %1246 = vmatpush1.msra.mxu0 0.0
    %1247 = vmatprep.subr.mxu0 0.0
    %1248 = vmatpush1.msra.mxu0 0.0
    %1249 = vmatprep.subr.mxu0 0.0
    %1250 = vmatpush1.msra.mxu0 0.0
    %1251 = vmatprep.subr.mxu0 0.0
    %1252 = vmatpush1.msra.mxu0 0.0
    %1253 = vmatprep.subr.mxu0 0.0
    %1254 = vmatpush1.msra.mxu0 0.0
    %1255 = vmatprep.subr.mxu0 0.0
    %1256 = vmatpush1.msra.mxu0 0.0
    %1257 = vmatprep.subr.mxu0 0.0
    %1258 = vmatpush1.msra.mxu0 0.0
    %1259 = vmatprep.subr.mxu0 0.0
    %1260 = vmatpush1.msra.mxu0 0.0
    %1261 = vmatprep.subr.mxu0 0.0
    %1262 = vmatpush1.msra.mxu0 0.0
    %1263 = vmatprep.subr.mxu0 0.0
    %1264 = vmatpush1.msra.mxu0 0.0
    %1265 = vmatprep.subr.mxu0 0.0
    %1266 = vmatpush1.msra.mxu0 0.0
    %1267 = vmatprep.subr.mxu0 0.0
    %1268 = vmatpush1.msra.mxu0 0.0
    %1269 = vmatprep.mubr.f32.mxu0 0.0
    %1270 = vmatmul.mubr.f32.gmra.mrb[0].mxu0 %v1203
    %v1271 = vpop.f32.mrb[0].mxu0
    %v1272 = vadd.f32 0.0, %v1271
    %v1273 = vpop.f32.mrb[0].mxu0
    %v1274 = vadd.f32 0.0, %v1273
    %1275 = vdwg.mxu0
    %1276 = vmatprep.subr.mxu0 %v239
    %1277 = vmatpush1.msra.mxu0 %v238
    %1278 = vmatprep.subr.mxu0 %v243
    %1279 = vmatpush1.msra.mxu0 %v242
    %1280 = vmatprep.subr.mxu0 %v247
    %1281 = vmatpush1.msra.mxu0 %v246
    %1282 = vmatprep.subr.mxu0 %v251
    %1283 = vmatpush1.msra.mxu0 %v250
    %1284 = vmatprep.subr.mxu0 %v255
    %1285 = vmatpush1.msra.mxu0 %v254
    %1286 = vmatprep.subr.mxu0 %v259
    %1287 = vmatpush1.msra.mxu0 %v258
    %1288 = vmatprep.subr.mxu0 %v263
    %1289 = vmatpush1.msra.mxu0 %v262
    %1290 = vmatprep.subr.mxu0 %v267
    %1291 = vmatpush1.msra.mxu0 %v266
    %1292 = vmatprep.subr.mxu0 %v271
    %1293 = vmatpush1.msra.mxu0 %v270
    %1294 = vmatprep.subr.mxu0 %v275
    %1295 = vmatpush1.msra.mxu0 %v274
    %1296 = vmatprep.subr.mxu0 %v279
    %1297 = vmatpush1.msra.mxu0 %v278
    %1298 = vmatprep.subr.mxu0 %v283
    %1299 = vmatpush1.msra.mxu0 %v282
    %1300 = vmatprep.subr.mxu0 %v287
    %1301 = vmatpush1.msra.mxu0 %v286
    %1302 = vmatprep.subr.mxu0 %v291
    %1303 = vmatpush1.msra.mxu0 %v290
    %1304 = vmatprep.subr.mxu0 %v295
    %1305 = vmatpush1.msra.mxu0 %v294
    %1306 = vmatprep.subr.mxu0 %v299
    %1307 = vmatpush1.msra.mxu0 %v298
    %1308 = vmatprep.subr.mxu0 0.0
    %1309 = vmatpush1.msra.mxu0 0.0
    %1310 = vmatprep.subr.mxu0 0.0
    %1311 = vmatpush1.msra.mxu0 0.0
    %1312 = vmatprep.subr.mxu0 0.0
    %1313 = vmatpush1.msra.mxu0 0.0
    %1314 = vmatprep.subr.mxu0 0.0
    %1315 = vmatpush1.msra.mxu0 0.0
    %1316 = vmatprep.subr.mxu0 0.0
    %1317 = vmatpush1.msra.mxu0 0.0
    %1318 = vmatprep.subr.mxu0 0.0
    %1319 = vmatpush1.msra.mxu0 0.0
    %1320 = vmatprep.subr.mxu0 0.0
    %1321 = vmatpush1.msra.mxu0 0.0
    %1322 = vmatprep.subr.mxu0 0.0
    %1323 = vmatpush1.msra.mxu0 0.0
    %1324 = vmatprep.subr.mxu0 0.0
    %1325 = vmatpush1.msra.mxu0 0.0
    %1326 = vmatprep.subr.mxu0 0.0
    %1327 = vmatpush1.msra.mxu0 0.0
    %1328 = vmatprep.subr.mxu0 0.0
    %1329 = vmatpush1.msra.mxu0 0.0
    %1330 = vmatprep.subr.mxu0 0.0
    %1331 = vmatpush1.msra.mxu0 0.0
    %1332 = vmatprep.subr.mxu0 0.0
    %1333 = vmatpush1.msra.mxu0 0.0
    %1334 = vmatprep.subr.mxu0 0.0
    %1335 = vmatpush1.msra.mxu0 0.0
    %1336 = vmatprep.subr.mxu0 0.0
    %1337 = vmatpush1.msra.mxu0 0.0
    %1338 = vmatprep.subr.mxu0 0.0
    %1339 = vmatpush1.msra.mxu0 0.0
    %1340 = vmatprep.mubr.f32.mxu0 0.0
    %1341 = vmatmul.mubr.f32.gmra.mrb[0].mxu0 %v1203
    %v1342 = vpop.f32.mrb[0].mxu0
    %v1343 = vadd.f32 0.0, %v1342
    %v1344 = vpop.f32.mrb[0].mxu0
    %v1345 = vadd.f32 0.0, %v1344
    %1346 = vdwg.mxu0
    %v1351 = vrot.slane %v1272, 4
    %v1352 = vrot.slane %v1274, 4
    %v1353 = vrot.slane %v1343, 4
    %v1354 = vrot.slane %v1345, 4
    %v1355 = vrot.slane %v1272, 5
    %v1356 = vrot.slane %v1274, 5
    %v1357 = vrot.slane %v1343, 5
    %v1358 = vrot.slane %v1345, 5
    %v1367 = vadd.f32 %v149, %v1351
    %v1368 = vadd.f32 %v151, %v1352
    %v1369 = vadd.f32 %v226, %v1353
    %v1370 = vadd.f32 %v228, %v1354
    %v1371 = vadd.f32 %v155, %v1355
    %v1372 = vadd.f32 %v157, %v1356
    %v1373 = vadd.f32 %v232, %v1357
    %v1374 = vadd.f32 %v234, %v1358
    %v1375 = vxor.u32 %v1367, 2147483648
    %v1376 = vxor.u32 %v1371, 2147483648
    %v1377 = vmul.f32 %v1375, 1.442695
    %v1378 = vpow.pop %v1377
    %v1379 = vmul.f32 %v1376, 1.442695
    %v1380 = vpow.pop %v1379
    %v1381 = vadd.f32 %v1378, 1.0
    %v1382 = vadd.f32 %v1380, 1.0
    %v1383 = vrcp.pop %v1381
    %v1384 = vmul.f32 1.0, %v1383
    %v1385 = vrcp.pop %v1382
    %v1386 = vmul.f32 1.0, %v1385
    %v1387 = vxor.u32 %v1368, 2147483648
    %v1388 = vxor.u32 %v1372, 2147483648
    %v1389 = vmul.f32 %v1387, 1.442695
    %v1390 = vpow.pop %v1389
    %v1391 = vmul.f32 %v1388, 1.442695
    %v1392 = vpow.pop %v1391
    %v1393 = vadd.f32 %v1390, 1.0
    %v1394 = vadd.f32 %v1392, 1.0
    %v1395 = vrcp.pop %v1393
    %v1396 = vmul.f32 1.0, %v1395
    %v1397 = vrcp.pop %v1394
    %v1398 = vmul.f32 1.0, %v1397
    %v1399 = vtanh.pop %v1369
    %v1400 = vtanh.pop %v1373
    %v1401 = vxor.u32 %v1370, 2147483648
    %v1402 = vxor.u32 %v1374, 2147483648
    %v1403 = vmul.f32 %v1401, 1.442695
    %v1404 = vpow.pop %v1403
    %v1405 = vmul.f32 %v1402, 1.442695
    %v1406 = vpow.pop %v1405
    %v1407 = vadd.f32 %v1404, 1.0
    %v1408 = vadd.f32 %v1406, 1.0
    %v1409 = vrcp.pop %v1407
    %v1410 = vmul.f32 1.0, %v1409
    %v1411 = vrcp.pop %v1408
    %v1412 = vmul.f32 1.0, %v1411
    %v1415 = vrot.slane %v1193, 7
    %v1416 = vrot.slane %v1194, 7
    %v1419 = vmul.f32 %v1396, %v1415
    %v1420 = vmul.f32 %v1398, %v1416
    %v1421 = vmul.f32 %v1384, %v1399
    %v1422 = vmul.f32 %v1386, %v1400
    %v1423 = vadd.f32 %v1419, %v1421
    %v1424 = vadd.f32 %v1420, %v1422
    %v1425 = vtanh.pop %v1423
    %v1426 = vtanh.pop %v1424
    %v1427 = vmul.f32 %v1410, %v1425
    %v1428 = vmul.f32 %v1412, %v1426
    %v1431 = vrot.slane %v1427, 4
    %v1432 = vrot.slane %v1428, 3
    %v1433 = vsel %vm517, %v1432, %v1431
    %1435 = vmatprep.subr.mxu0 %v237
    %1436 = vmatpush1.msra.mxu0 %v236
    %1437 = vmatprep.subr.mxu0 %v241
    %1438 = vmatpush1.msra.mxu0 %v240
    %1439 = vmatprep.subr.mxu0 %v245
    %1440 = vmatpush1.msra.mxu0 %v244
    %1441 = vmatprep.subr.mxu0 %v249
    %1442 = vmatpush1.msra.mxu0 %v248
    %1443 = vmatprep.subr.mxu0 %v253
    %1444 = vmatpush1.msra.mxu0 %v252
    %1445 = vmatprep.subr.mxu0 %v257
    %1446 = vmatpush1.msra.mxu0 %v256
    %1447 = vmatprep.subr.mxu0 %v261
    %1448 = vmatpush1.msra.mxu0 %v260
    %1449 = vmatprep.subr.mxu0 %v265
    %1450 = vmatpush1.msra.mxu0 %v264
    %1451 = vmatprep.subr.mxu0 %v269
    %1452 = vmatpush1.msra.mxu0 %v268
    %1453 = vmatprep.subr.mxu0 %v273
    %1454 = vmatpush1.msra.mxu0 %v272
    %1455 = vmatprep.subr.mxu0 %v277
    %1456 = vmatpush1.msra.mxu0 %v276
    %1457 = vmatprep.subr.mxu0 %v281
    %1458 = vmatpush1.msra.mxu0 %v280
    %1459 = vmatprep.subr.mxu0 %v285
    %1460 = vmatpush1.msra.mxu0 %v284
    %1461 = vmatprep.subr.mxu0 %v289
    %1462 = vmatpush1.msra.mxu0 %v288
    %1463 = vmatprep.subr.mxu0 %v293
    %1464 = vmatpush1.msra.mxu0 %v292
    %1465 = vmatprep.subr.mxu0 %v297
    %1466 = vmatpush1.msra.mxu0 %v296
    %1467 = vmatprep.subr.mxu0 0.0
    %1468 = vmatpush1.msra.mxu0 0.0
    %1469 = vmatprep.subr.mxu0 0.0
    %1470 = vmatpush1.msra.mxu0 0.0
    %1471 = vmatprep.subr.mxu0 0.0
    %1472 = vmatpush1.msra.mxu0 0.0
    %1473 = vmatprep.subr.mxu0 0.0
    %1474 = vmatpush1.msra.mxu0 0.0
    %1475 = vmatprep.subr.mxu0 0.0
    %1476 = vmatpush1.msra.mxu0 0.0
    %1477 = vmatprep.subr.mxu0 0.0
    %1478 = vmatpush1.msra.mxu0 0.0
    %1479 = vmatprep.subr.mxu0 0.0
    %1480 = vmatpush1.msra.mxu0 0.0
    %1481 = vmatprep.subr.mxu0 0.0
    %1482 = vmatpush1.msra.mxu0 0.0
    %1483 = vmatprep.subr.mxu0 0.0
    %1484 = vmatpush1.msra.mxu0 0.0
    %1485 = vmatprep.subr.mxu0 0.0
    %1486 = vmatpush1.msra.mxu0 0.0
    %1487 = vmatprep.subr.mxu0 0.0
    %1488 = vmatpush1.msra.mxu0 0.0
    %1489 = vmatprep.subr.mxu0 0.0
    %1490 = vmatpush1.msra.mxu0 0.0
    %1491 = vmatprep.subr.mxu0 0.0
    %1492 = vmatpush1.msra.mxu0 0.0
    %1493 = vmatprep.subr.mxu0 0.0
    %1494 = vmatpush1.msra.mxu0 0.0
    %1495 = vmatprep.subr.mxu0 0.0
    %1496 = vmatpush1.msra.mxu0 0.0
    %1497 = vmatprep.subr.mxu0 0.0
    %1498 = vmatpush1.msra.mxu0 0.0
    %1499 = vmatprep.mubr.f32.mxu0 0.0
    %1500 = vmatmul.mubr.f32.gmra.mrb[0].mxu0 %v1433
    %v1501 = vpop.f32.mrb[0].mxu0
    %v1502 = vadd.f32 0.0, %v1501
    %v1503 = vpop.f32.mrb[0].mxu0
    %v1504 = vadd.f32 0.0, %v1503
    %1505 = vdwg.mxu0
    %1506 = vmatprep.subr.mxu0 %v239
    %1507 = vmatpush1.msra.mxu0 %v238
    %1508 = vmatprep.subr.mxu0 %v243
    %1509 = vmatpush1.msra.mxu0 %v242
    %1510 = vmatprep.subr.mxu0 %v247
    %1511 = vmatpush1.msra.mxu0 %v246
    %1512 = vmatprep.subr.mxu0 %v251
    %1513 = vmatpush1.msra.mxu0 %v250
    %1514 = vmatprep.subr.mxu0 %v255
    %1515 = vmatpush1.msra.mxu0 %v254
    %1516 = vmatprep.subr.mxu0 %v259
    %1517 = vmatpush1.msra.mxu0 %v258
    %1518 = vmatprep.subr.mxu0 %v263
    %1519 = vmatpush1.msra.mxu0 %v262
    %1520 = vmatprep.subr.mxu0 %v267
    %1521 = vmatpush1.msra.mxu0 %v266
    %1522 = vmatprep.subr.mxu0 %v271
    %1523 = vmatpush1.msra.mxu0 %v270
    %1524 = vmatprep.subr.mxu0 %v275
    %1525 = vmatpush1.msra.mxu0 %v274
    %1526 = vmatprep.subr.mxu0 %v279
    %1527 = vmatpush1.msra.mxu0 %v278
    %1528 = vmatprep.subr.mxu0 %v283
    %1529 = vmatpush1.msra.mxu0 %v282
    %1530 = vmatprep.subr.mxu0 %v287
    %1531 = vmatpush1.msra.mxu0 %v286
    %1532 = vmatprep.subr.mxu0 %v291
    %1533 = vmatpush1.msra.mxu0 %v290
    %1534 = vmatprep.subr.mxu0 %v295
    %1535 = vmatpush1.msra.mxu0 %v294
    %1536 = vmatprep.subr.mxu0 %v299
    %1537 = vmatpush1.msra.mxu0 %v298
    %1538 = vmatprep.subr.mxu0 0.0
    %1539 = vmatpush1.msra.mxu0 0.0
    %1540 = vmatprep.subr.mxu0 0.0
    %1541 = vmatpush1.msra.mxu0 0.0
    %1542 = vmatprep.subr.mxu0 0.0
    %1543 = vmatpush1.msra.mxu0 0.0
    %1544 = vmatprep.subr.mxu0 0.0
    %1545 = vmatpush1.msra.mxu0 0.0
    %1546 = vmatprep.subr.mxu0 0.0
    %1547 = vmatpush1.msra.mxu0 0.0
    %1548 = vmatprep.subr.mxu0 0.0
    %1549 = vmatpush1.msra.mxu0 0.0
    %1550 = vmatprep.subr.mxu0 0.0
    %1551 = vmatpush1.msra.mxu0 0.0
    %1552 = vmatprep.subr.mxu0 0.0
    %1553 = vmatpush1.msra.mxu0 0.0
    %1554 = vmatprep.subr.mxu0 0.0
    %1555 = vmatpush1.msra.mxu0 0.0
    %1556 = vmatprep.subr.mxu0 0.0
    %1557 = vmatpush1.msra.mxu0 0.0
    %1558 = vmatprep.subr.mxu0 0.0
    %1559 = vmatpush1.msra.mxu0 0.0
    %1560 = vmatprep.subr.mxu0 0.0
    %1561 = vmatpush1.msra.mxu0 0.0
    %1562 = vmatprep.subr.mxu0 0.0
    %1563 = vmatpush1.msra.mxu0 0.0
    %1564 = vmatprep.subr.mxu0 0.0
    %1565 = vmatpush1.msra.mxu0 0.0
    %1566 = vmatprep.subr.mxu0 0.0
    %1567 = vmatpush1.msra.mxu0 0.0
    %1568 = vmatprep.subr.mxu0 0.0
    %1569 = vmatpush1.msra.mxu0 0.0
    %1570 = vmatprep.mubr.f32.mxu0 0.0
    %1571 = vmatmul.mubr.f32.gmra.mrb[0].mxu0 %v1433
    %v1572 = vpop.f32.mrb[0].mxu0
    %v1573 = vadd.f32 0.0, %v1572
    %v1574 = vpop.f32.mrb[0].mxu0
    %v1575 = vadd.f32 0.0, %v1574
    %1576 = vdwg.mxu0
    %v1581 = vrot.slane %v1502, 3
    %v1582 = vrot.slane %v1504, 3
    %v1583 = vrot.slane %v1573, 3
    %v1584 = vrot.slane %v1575, 3
    %v1585 = vrot.slane %v1502, 4
    %v1586 = vrot.slane %v1504, 4
    %v1587 = vrot.slane %v1573, 4
    %v1588 = vrot.slane %v1575, 4
    %v1597 = vadd.f32 %v149, %v1581
    %v1598 = vadd.f32 %v151, %v1582
    %v1599 = vadd.f32 %v226, %v1583
    %v1600 = vadd.f32 %v228, %v1584
    %v1601 = vadd.f32 %v155, %v1585
    %v1602 = vadd.f32 %v157, %v1586
    %v1603 = vadd.f32 %v232, %v1587
    %v1604 = vadd.f32 %v234, %v1588
    %v1605 = vxor.u32 %v1597, 2147483648
    %v1606 = vxor.u32 %v1601, 2147483648
    %v1607 = vmul.f32 %v1605, 1.442695
    %v1608 = vpow.pop %v1607
    %v1609 = vmul.f32 %v1606, 1.442695
    %v1610 = vpow.pop %v1609
    %v1611 = vadd.f32 %v1608, 1.0
    %v1612 = vadd.f32 %v1610, 1.0
    %v1613 = vrcp.pop %v1611
    %v1614 = vmul.f32 1.0, %v1613
    %v1615 = vrcp.pop %v1612
    %v1616 = vmul.f32 1.0, %v1615
    %v1617 = vxor.u32 %v1598, 2147483648
    %v1618 = vxor.u32 %v1602, 2147483648
    %v1619 = vmul.f32 %v1617, 1.442695
    %v1620 = vpow.pop %v1619
    %v1621 = vmul.f32 %v1618, 1.442695
    %v1622 = vpow.pop %v1621
    %v1623 = vadd.f32 %v1620, 1.0
    %v1624 = vadd.f32 %v1622, 1.0
    %v1625 = vrcp.pop %v1623
    %v1626 = vmul.f32 1.0, %v1625
    %v1627 = vrcp.pop %v1624
    %v1628 = vmul.f32 1.0, %v1627
    %v1629 = vtanh.pop %v1599
    %v1630 = vtanh.pop %v1603
    %v1631 = vxor.u32 %v1600, 2147483648
    %v1632 = vxor.u32 %v1604, 2147483648
    %v1633 = vmul.f32 %v1631, 1.442695
    %v1634 = vpow.pop %v1633
    %v1635 = vmul.f32 %v1632, 1.442695
    %v1636 = vpow.pop %v1635
    %v1637 = vadd.f32 %v1634, 1.0
    %v1638 = vadd.f32 %v1636, 1.0
    %v1639 = vrcp.pop %v1637
    %v1640 = vmul.f32 1.0, %v1639
    %v1641 = vrcp.pop %v1638
    %v1642 = vmul.f32 1.0, %v1641
    %v1645 = vrot.slane %v1423, 7
    %v1646 = vrot.slane %v1424, 7
    %v1649 = vmul.f32 %v1626, %v1645
    %v1650 = vmul.f32 %v1628, %v1646
    %v1651 = vmul.f32 %v1614, %v1629
    %v1652 = vmul.f32 %v1616, %v1630
    %v1653 = vadd.f32 %v1649, %v1651
    %v1654 = vadd.f32 %v1650, %v1652
    %v1655 = vtanh.pop %v1653
    %v1656 = vtanh.pop %v1654
    %v1657 = vmul.f32 %v1640, %v1655
    %v1658 = vmul.f32 %v1642, %v1656
    %v1661 = vrot.slane %v1657, 5
    %v1662 = vrot.slane %v1658, 4
    %v1663 = vsel %vm517, %v1662, %v1661
    %1665 = vmatprep.subr.mxu0 %v237
    %1666 = vmatpush1.msra.mxu0 %v236
    %1667 = vmatprep.subr.mxu0 %v241
    %1668 = vmatpush1.msra.mxu0 %v240
    %1669 = vmatprep.subr.mxu0 %v245
    %1670 = vmatpush1.msra.mxu0 %v244
    %1671 = vmatprep.subr.mxu0 %v249
    %1672 = vmatpush1.msra.mxu0 %v248
    %1673 = vmatprep.subr.mxu0 %v253
    %1674 = vmatpush1.msra.mxu0 %v252
    %1675 = vmatprep.subr.mxu0 %v257
    %1676 = vmatpush1.msra.mxu0 %v256
    %1677 = vmatprep.subr.mxu0 %v261
    %1678 = vmatpush1.msra.mxu0 %v260
    %1679 = vmatprep.subr.mxu0 %v265
    %1680 = vmatpush1.msra.mxu0 %v264
    %1681 = vmatprep.subr.mxu0 %v269
    %1682 = vmatpush1.msra.mxu0 %v268
    %1683 = vmatprep.subr.mxu0 %v273
    %1684 = vmatpush1.msra.mxu0 %v272
    %1685 = vmatprep.subr.mxu0 %v277
    %1686 = vmatpush1.msra.mxu0 %v276
    %1687 = vmatprep.subr.mxu0 %v281
    %1688 = vmatpush1.msra.mxu0 %v280
    %1689 = vmatprep.subr.mxu0 %v285
    %1690 = vmatpush1.msra.mxu0 %v284
    %1691 = vmatprep.subr.mxu0 %v289
    %1692 = vmatpush1.msra.mxu0 %v288
    %1693 = vmatprep.subr.mxu0 %v293
    %1694 = vmatpush1.msra.mxu0 %v292
    %1695 = vmatprep.subr.mxu0 %v297
    %1696 = vmatpush1.msra.mxu0 %v296
    %1697 = vmatprep.subr.mxu0 0.0
    %1698 = vmatpush1.msra.mxu0 0.0
    %1699 = vmatprep.subr.mxu0 0.0
    %1700 = vmatpush1.msra.mxu0 0.0
    %1701 = vmatprep.subr.mxu0 0.0
    %1702 = vmatpush1.msra.mxu0 0.0
    %1703 = vmatprep.subr.mxu0 0.0
    %1704 = vmatpush1.msra.mxu0 0.0
    %1705 = vmatprep.subr.mxu0 0.0
    %1706 = vmatpush1.msra.mxu0 0.0
    %1707 = vmatprep.subr.mxu0 0.0
    %1708 = vmatpush1.msra.mxu0 0.0
    %1709 = vmatprep.subr.mxu0 0.0
    %1710 = vmatpush1.msra.mxu0 0.0
    %1711 = vmatprep.subr.mxu0 0.0
    %1712 = vmatpush1.msra.mxu0 0.0
    %1713 = vmatprep.subr.mxu0 0.0
    %1714 = vmatpush1.msra.mxu0 0.0
    %1715 = vmatprep.subr.mxu0 0.0
    %1716 = vmatpush1.msra.mxu0 0.0
    %1717 = vmatprep.subr.mxu0 0.0
    %1718 = vmatpush1.msra.mxu0 0.0
    %1719 = vmatprep.subr.mxu0 0.0
    %1720 = vmatpush1.msra.mxu0 0.0
    %1721 = vmatprep.subr.mxu0 0.0
    %1722 = vmatpush1.msra.mxu0 0.0
    %1723 = vmatprep.subr.mxu0 0.0
    %1724 = vmatpush1.msra.mxu0 0.0
    %1725 = vmatprep.subr.mxu0 0.0
    %1726 = vmatpush1.msra.mxu0 0.0
    %1727 = vmatprep.subr.mxu0 0.0
    %1728 = vmatpush1.msra.mxu0 0.0
    %1729 = vmatprep.mubr.f32.mxu0 0.0
    %1730 = vmatmul.mubr.f32.gmra.mrb[0].mxu0 %v1663
    %v1731 = vpop.f32.mrb[0].mxu0
    %v1732 = vadd.f32 0.0, %v1731
    %v1733 = vpop.f32.mrb[0].mxu0
    %v1734 = vadd.f32 0.0, %v1733
    %1735 = vdwg.mxu0
    %1736 = vmatprep.subr.mxu0 %v239
    %1737 = vmatpush1.msra.mxu0 %v238
    %1738 = vmatprep.subr.mxu0 %v243
    %1739 = vmatpush1.msra.mxu0 %v242
    %1740 = vmatprep.subr.mxu0 %v247
    %1741 = vmatpush1.msra.mxu0 %v246
    %1742 = vmatprep.subr.mxu0 %v251
    %1743 = vmatpush1.msra.mxu0 %v250
    %1744 = vmatprep.subr.mxu0 %v255
    %1745 = vmatpush1.msra.mxu0 %v254
    %1746 = vmatprep.subr.mxu0 %v259
    %1747 = vmatpush1.msra.mxu0 %v258
    %1748 = vmatprep.subr.mxu0 %v263
    %1749 = vmatpush1.msra.mxu0 %v262
    %1750 = vmatprep.subr.mxu0 %v267
    %1751 = vmatpush1.msra.mxu0 %v266
    %1752 = vmatprep.subr.mxu0 %v271
    %1753 = vmatpush1.msra.mxu0 %v270
    %1754 = vmatprep.subr.mxu0 %v275
    %1755 = vmatpush1.msra.mxu0 %v274
    %1756 = vmatprep.subr.mxu0 %v279
    %1757 = vmatpush1.msra.mxu0 %v278
    %1758 = vmatprep.subr.mxu0 %v283
    %1759 = vmatpush1.msra.mxu0 %v282
    %1760 = vmatprep.subr.mxu0 %v287
    %1761 = vmatpush1.msra.mxu0 %v286
    %1762 = vmatprep.subr.mxu0 %v291
    %1763 = vmatpush1.msra.mxu0 %v290
    %1764 = vmatprep.subr.mxu0 %v295
    %1765 = vmatpush1.msra.mxu0 %v294
    %1766 = vmatprep.subr.mxu0 %v299
    %1767 = vmatpush1.msra.mxu0 %v298
    %1768 = vmatprep.subr.mxu0 0.0
    %1769 = vmatpush1.msra.mxu0 0.0
    %1770 = vmatprep.subr.mxu0 0.0
    %1771 = vmatpush1.msra.mxu0 0.0
    %1772 = vmatprep.subr.mxu0 0.0
    %1773 = vmatpush1.msra.mxu0 0.0
    %1774 = vmatprep.subr.mxu0 0.0
    %1775 = vmatpush1.msra.mxu0 0.0
    %1776 = vmatprep.subr.mxu0 0.0
    %1777 = vmatpush1.msra.mxu0 0.0
    %1778 = vmatprep.subr.mxu0 0.0
    %1779 = vmatpush1.msra.mxu0 0.0
    %1780 = vmatprep.subr.mxu0 0.0
    %1781 = vmatpush1.msra.mxu0 0.0
    %1782 = vmatprep.subr.mxu0 0.0
    %1783 = vmatpush1.msra.mxu0 0.0
    %1784 = vmatprep.subr.mxu0 0.0
    %1785 = vmatpush1.msra.mxu0 0.0
    %1786 = vmatprep.subr.mxu0 0.0
    %1787 = vmatpush1.msra.mxu0 0.0
    %1788 = vmatprep.subr.mxu0 0.0
    %1789 = vmatpush1.msra.mxu0 0.0
    %1790 = vmatprep.subr.mxu0 0.0
    %1791 = vmatpush1.msra.mxu0 0.0
    %1792 = vmatprep.subr.mxu0 0.0
    %1793 = vmatpush1.msra.mxu0 0.0
    %1794 = vmatprep.subr.mxu0 0.0
    %1795 = vmatpush1.msra.mxu0 0.0
    %1796 = vmatprep.subr.mxu0 0.0
    %1797 = vmatpush1.msra.mxu0 0.0
    %1798 = vmatprep.subr.mxu0 0.0
    %1799 = vmatpush1.msra.mxu0 0.0
    %1800 = vmatprep.mubr.f32.mxu0 0.0
    %1801 = vmatmul.mubr.f32.gmra.mrb[0].mxu0 %v1663
    %v1802 = vpop.f32.mrb[0].mxu0
    %v1803 = vadd.f32 0.0, %v1802
    %v1804 = vpop.f32.mrb[0].mxu0
    %v1805 = vadd.f32 0.0, %v1804
    %1806 = vdwg.mxu0
    %v1811 = vrot.slane %v1732, 2
    %v1812 = vrot.slane %v1734, 2
    %v1813 = vrot.slane %v1803, 2
    %v1814 = vrot.slane %v1805, 2
    %v1815 = vrot.slane %v1732, 3
    %v1816 = vrot.slane %v1734, 3
    %v1817 = vrot.slane %v1803, 3
    %v1818 = vrot.slane %v1805, 3
    %v1827 = vadd.f32 %v149, %v1811
    %v1828 = vadd.f32 %v151, %v1812
    %v1829 = vadd.f32 %v226, %v1813
    %v1830 = vadd.f32 %v228, %v1814
    %v1831 = vadd.f32 %v155, %v1815
    %v1832 = vadd.f32 %v157, %v1816
    %v1833 = vadd.f32 %v232, %v1817
    %v1834 = vadd.f32 %v234, %v1818
    %v1835 = vxor.u32 %v1827, 2147483648
    %v1836 = vxor.u32 %v1831, 2147483648
    %v1837 = vmul.f32 %v1835, 1.442695
    %v1838 = vpow.pop %v1837
    %v1839 = vmul.f32 %v1836, 1.442695
    %v1840 = vpow.pop %v1839
    %v1841 = vadd.f32 %v1838, 1.0
    %v1842 = vadd.f32 %v1840, 1.0
    %v1843 = vrcp.pop %v1841
    %v1844 = vmul.f32 1.0, %v1843
    %v1845 = vrcp.pop %v1842
    %v1846 = vmul.f32 1.0, %v1845
    %v1847 = vxor.u32 %v1828, 2147483648
    %v1848 = vxor.u32 %v1832, 2147483648
    %v1849 = vmul.f32 %v1847, 1.442695
    %v1850 = vpow.pop %v1849
    %v1851 = vmul.f32 %v1848, 1.442695
    %v1852 = vpow.pop %v1851
    %v1853 = vadd.f32 %v1850, 1.0
    %v1854 = vadd.f32 %v1852, 1.0
    %v1855 = vrcp.pop %v1853
    %v1856 = vmul.f32 1.0, %v1855
    %v1857 = vrcp.pop %v1854
    %v1858 = vmul.f32 1.0, %v1857
    %v1859 = vtanh.pop %v1829
    %v1860 = vtanh.pop %v1833
    %v1861 = vxor.u32 %v1830, 2147483648
    %v1862 = vxor.u32 %v1834, 2147483648
    %v1863 = vmul.f32 %v1861, 1.442695
    %v1864 = vpow.pop %v1863
    %v1865 = vmul.f32 %v1862, 1.442695
    %v1866 = vpow.pop %v1865
    %v1867 = vadd.f32 %v1864, 1.0
    %v1868 = vadd.f32 %v1866, 1.0
    %v1869 = vrcp.pop %v1867
    %v1870 = vmul.f32 1.0, %v1869
    %v1871 = vrcp.pop %v1868
    %v1872 = vmul.f32 1.0, %v1871
    %v1875 = vrot.slane %v1653, 7
    %v1876 = vrot.slane %v1654, 7
    %v1879 = vmul.f32 %v1856, %v1875
    %v1880 = vmul.f32 %v1858, %v1876
    %v1881 = vmul.f32 %v1844, %v1859
    %v1882 = vmul.f32 %v1846, %v1860
    %v1883 = vadd.f32 %v1879, %v1881
    %v1884 = vadd.f32 %v1880, %v1882
    %v1885 = vtanh.pop %v1883
    %v1886 = vtanh.pop %v1884
    %v1887 = vmul.f32 %v1870, %v1885
    %v1888 = vmul.f32 %v1872, %v1886
    %v1891 = vrot.slane %v1887, 6
    %v1892 = vrot.slane %v1888, 5
    %v1893 = vsel %vm517, %v1892, %v1891
    %1895 = vmatprep.subr.mxu0 %v237
    %1896 = vmatpush1.msra.mxu0 %v236
    %1897 = vmatprep.subr.mxu0 %v241
    %1898 = vmatpush1.msra.mxu0 %v240
    %1899 = vmatprep.subr.mxu0 %v245
    %1900 = vmatpush1.msra.mxu0 %v244
    %1901 = vmatprep.subr.mxu0 %v249
    %1902 = vmatpush1.msra.mxu0 %v248
    %1903 = vmatprep.subr.mxu0 %v253
    %1904 = vmatpush1.msra.mxu0 %v252
    %1905 = vmatprep.subr.mxu0 %v257
    %1906 = vmatpush1.msra.mxu0 %v256
    %1907 = vmatprep.subr.mxu0 %v261
    %1908 = vmatpush1.msra.mxu0 %v260
    %1909 = vmatprep.subr.mxu0 %v265
    %1910 = vmatpush1.msra.mxu0 %v264
    %1911 = vmatprep.subr.mxu0 %v269
    %1912 = vmatpush1.msra.mxu0 %v268
    %1913 = vmatprep.subr.mxu0 %v273
    %1914 = vmatpush1.msra.mxu0 %v272
    %1915 = vmatprep.subr.mxu0 %v277
    %1916 = vmatpush1.msra.mxu0 %v276
    %1917 = vmatprep.subr.mxu0 %v281
    %1918 = vmatpush1.msra.mxu0 %v280
    %1919 = vmatprep.subr.mxu0 %v285
    %1920 = vmatpush1.msra.mxu0 %v284
    %1921 = vmatprep.subr.mxu0 %v289
    %1922 = vmatpush1.msra.mxu0 %v288
    %1923 = vmatprep.subr.mxu0 %v293
    %1924 = vmatpush1.msra.mxu0 %v292
    %1925 = vmatprep.subr.mxu0 %v297
    %1926 = vmatpush1.msra.mxu0 %v296
    %1927 = vmatprep.subr.mxu0 0.0
    %1928 = vmatpush1.msra.mxu0 0.0
    %1929 = vmatprep.subr.mxu0 0.0
    %1930 = vmatpush1.msra.mxu0 0.0
    %1931 = vmatprep.subr.mxu0 0.0
    %1932 = vmatpush1.msra.mxu0 0.0
    %1933 = vmatprep.subr.mxu0 0.0
    %1934 = vmatpush1.msra.mxu0 0.0
    %1935 = vmatprep.subr.mxu0 0.0
    %1936 = vmatpush1.msra.mxu0 0.0
    %1937 = vmatprep.subr.mxu0 0.0
    %1938 = vmatpush1.msra.mxu0 0.0
    %1939 = vmatprep.subr.mxu0 0.0
    %1940 = vmatpush1.msra.mxu0 0.0
    %1941 = vmatprep.subr.mxu0 0.0
    %1942 = vmatpush1.msra.mxu0 0.0
    %1943 = vmatprep.subr.mxu0 0.0
    %1944 = vmatpush1.msra.mxu0 0.0
    %1945 = vmatprep.subr.mxu0 0.0
    %1946 = vmatpush1.msra.mxu0 0.0
    %1947 = vmatprep.subr.mxu0 0.0
    %1948 = vmatpush1.msra.mxu0 0.0
    %1949 = vmatprep.subr.mxu0 0.0
    %1950 = vmatpush1.msra.mxu0 0.0
    %1951 = vmatprep.subr.mxu0 0.0
    %1952 = vmatpush1.msra.mxu0 0.0
    %1953 = vmatprep.subr.mxu0 0.0
    %1954 = vmatpush1.msra.mxu0 0.0
    %1955 = vmatprep.subr.mxu0 0.0
    %1956 = vmatpush1.msra.mxu0 0.0
    %1957 = vmatprep.subr.mxu0 0.0
    %1958 = vmatpush1.msra.mxu0 0.0
    %1959 = vmatprep.mubr.f32.mxu0 0.0
    %1960 = vmatmul.mubr.f32.gmra.mrb[0].mxu0 %v1893
    %v1961 = vpop.f32.mrb[0].mxu0
    %v1962 = vadd.f32 0.0, %v1961
    %v1963 = vpop.f32.mrb[0].mxu0
    %v1964 = vadd.f32 0.0, %v1963
    %1965 = vdwg.mxu0
    %1966 = vmatprep.subr.mxu0 %v239
    %1967 = vmatpush1.msra.mxu0 %v238
    %1968 = vmatprep.subr.mxu0 %v243
    %1969 = vmatpush1.msra.mxu0 %v242
    %1970 = vmatprep.subr.mxu0 %v247
    %1971 = vmatpush1.msra.mxu0 %v246
    %1972 = vmatprep.subr.mxu0 %v251
    %1973 = vmatpush1.msra.mxu0 %v250
    %1974 = vmatprep.subr.mxu0 %v255
    %1975 = vmatpush1.msra.mxu0 %v254
    %1976 = vmatprep.subr.mxu0 %v259
    %1977 = vmatpush1.msra.mxu0 %v258
    %1978 = vmatprep.subr.mxu0 %v263
    %1979 = vmatpush1.msra.mxu0 %v262
    %1980 = vmatprep.subr.mxu0 %v267
    %1981 = vmatpush1.msra.mxu0 %v266
    %1982 = vmatprep.subr.mxu0 %v271
    %1983 = vmatpush1.msra.mxu0 %v270
    %1984 = vmatprep.subr.mxu0 %v275
    %1985 = vmatpush1.msra.mxu0 %v274
    %1986 = vmatprep.subr.mxu0 %v279
    %1987 = vmatpush1.msra.mxu0 %v278
    %1988 = vmatprep.subr.mxu0 %v283
    %1989 = vmatpush1.msra.mxu0 %v282
    %1990 = vmatprep.subr.mxu0 %v287
    %1991 = vmatpush1.msra.mxu0 %v286
    %1992 = vmatprep.subr.mxu0 %v291
    %1993 = vmatpush1.msra.mxu0 %v290
    %1994 = vmatprep.subr.mxu0 %v295
    %1995 = vmatpush1.msra.mxu0 %v294
    %1996 = vmatprep.subr.mxu0 %v299
    %1997 = vmatpush1.msra.mxu0 %v298
    %1998 = vmatprep.subr.mxu0 0.0
    %1999 = vmatpush1.msra.mxu0 0.0
    %2000 = vmatprep.subr.mxu0 0.0
    %2001 = vmatpush1.msra.mxu0 0.0
    %2002 = vmatprep.subr.mxu0 0.0
    %2003 = vmatpush1.msra.mxu0 0.0
    %2004 = vmatprep.subr.mxu0 0.0
    %2005 = vmatpush1.msra.mxu0 0.0
    %2006 = vmatprep.subr.mxu0 0.0
    %2007 = vmatpush1.msra.mxu0 0.0
    %2008 = vmatprep.subr.mxu0 0.0
    %2009 = vmatpush1.msra.mxu0 0.0
    %2010 = vmatprep.subr.mxu0 0.0
    %2011 = vmatpush1.msra.mxu0 0.0
    %2012 = vmatprep.subr.mxu0 0.0
    %2013 = vmatpush1.msra.mxu0 0.0
    %2014 = vmatprep.subr.mxu0 0.0
    %2015 = vmatpush1.msra.mxu0 0.0
    %2016 = vmatprep.subr.mxu0 0.0
    %2017 = vmatpush1.msra.mxu0 0.0
    %2018 = vmatprep.subr.mxu0 0.0
    %2019 = vmatpush1.msra.mxu0 0.0
    %2020 = vmatprep.subr.mxu0 0.0
    %2021 = vmatpush1.msra.mxu0 0.0
    %2022 = vmatprep.subr.mxu0 0.0
    %2023 = vmatpush1.msra.mxu0 0.0
    %2024 = vmatprep.subr.mxu0 0.0
    %2025 = vmatpush1.msra.mxu0 0.0
    %2026 = vmatprep.subr.mxu0 0.0
    %2027 = vmatpush1.msra.mxu0 0.0
    %2028 = vmatprep.subr.mxu0 0.0
    %2029 = vmatpush1.msra.mxu0 0.0
    %2030 = vmatprep.mubr.f32.mxu0 0.0
    %2031 = vmatmul.mubr.f32.gmra.mrb[0].mxu0 %v1893
    %v2032 = vpop.f32.mrb[0].mxu0
    %v2033 = vadd.f32 0.0, %v2032
    %v2034 = vpop.f32.mrb[0].mxu0
    %v2035 = vadd.f32 0.0, %v2034
    %2036 = vdwg.mxu0
    %v2041 = vrot.slane %v1962, 1
    %v2042 = vrot.slane %v1964, 1
    %v2043 = vrot.slane %v2033, 1
    %v2044 = vrot.slane %v2035, 1
    %v2045 = vrot.slane %v1962, 2
    %v2046 = vrot.slane %v1964, 2
    %v2047 = vrot.slane %v2033, 2
    %v2048 = vrot.slane %v2035, 2
    %v2057 = vadd.f32 %v149, %v2041
    %v2058 = vadd.f32 %v151, %v2042
    %v2059 = vadd.f32 %v226, %v2043
    %v2060 = vadd.f32 %v228, %v2044
    %v2061 = vadd.f32 %v155, %v2045
    %v2062 = vadd.f32 %v157, %v2046
    %v2063 = vadd.f32 %v232, %v2047
    %v2064 = vadd.f32 %v234, %v2048
    %v2065 = vxor.u32 %v2057, 2147483648
    %v2066 = vxor.u32 %v2061, 2147483648
    %v2067 = vmul.f32 %v2065, 1.442695
    %v2068 = vpow.pop %v2067
    %v2069 = vmul.f32 %v2066, 1.442695
    %v2070 = vpow.pop %v2069
    %v2071 = vadd.f32 %v2068, 1.0
    %v2072 = vadd.f32 %v2070, 1.0
    %v2073 = vrcp.pop %v2071
    %v2074 = vmul.f32 1.0, %v2073
    %v2075 = vrcp.pop %v2072
    %v2076 = vmul.f32 1.0, %v2075
    %v2077 = vxor.u32 %v2058, 2147483648
    %v2078 = vxor.u32 %v2062, 2147483648
    %v2079 = vmul.f32 %v2077, 1.442695
    %v2080 = vpow.pop %v2079
    %v2081 = vmul.f32 %v2078, 1.442695
    %v2082 = vpow.pop %v2081
    %v2083 = vadd.f32 %v2080, 1.0
    %v2084 = vadd.f32 %v2082, 1.0
    %v2085 = vrcp.pop %v2083
    %v2086 = vmul.f32 1.0, %v2085
    %v2087 = vrcp.pop %v2084
    %v2088 = vmul.f32 1.0, %v2087
    %v2089 = vtanh.pop %v2059
    %v2090 = vtanh.pop %v2063
    %v2091 = vxor.u32 %v2060, 2147483648
    %v2092 = vxor.u32 %v2064, 2147483648
    %v2093 = vmul.f32 %v2091, 1.442695
    %v2094 = vpow.pop %v2093
    %v2095 = vmul.f32 %v2092, 1.442695
    %v2096 = vpow.pop %v2095
    %v2097 = vadd.f32 %v2094, 1.0
    %v2098 = vadd.f32 %v2096, 1.0
    %v2099 = vrcp.pop %v2097
    %v2100 = vmul.f32 1.0, %v2099
    %v2101 = vrcp.pop %v2098
    %v2102 = vmul.f32 1.0, %v2101
    %v2105 = vrot.slane %v1883, 7
    %v2106 = vrot.slane %v1884, 7
    %v2109 = vmul.f32 %v2086, %v2105
    %v2110 = vmul.f32 %v2088, %v2106
    %v2111 = vmul.f32 %v2074, %v2089
    %v2112 = vmul.f32 %v2076, %v2090
    %v2113 = vadd.f32 %v2109, %v2111
    %v2114 = vadd.f32 %v2110, %v2112
    %v2115 = vtanh.pop %v2113
    %v2116 = vtanh.pop %v2114
    %v2117 = vmul.f32 %v2100, %v2115
    %v2118 = vmul.f32 %v2102, %v2116
    %v2119 = vld [vmem:[%s4] sm:$0xff]
    %v2120 = vld [vmem:[%s4 + $0x8] sm:$0xff]
    %v2121 = vld [vmem:[%s4 + $0x10] sm:$0xff]
    %v2122 = vld [vmem:[%s4 + $0x18] sm:$0xff]
    %v2123 = vld [vmem:[%s4 + $0x20] sm:$0xff]
    %v2124 = vld [vmem:[%s4 + $0x28] sm:$0xff]
    %v2125 = vld [vmem:[%s4 + $0x30] sm:$0xff]
    %v2126 = vld [vmem:[%s4 + $0x38] sm:$0xff]
    %v2127 = vld [vmem:[%s4 + $0x40] sm:$0xff]
    %v2128 = vld [vmem:[%s4 + $0x48] sm:$0xff]
    %v2129 = vld [vmem:[%s4 + $0x50] sm:$0xff]
    %v2130 = vld [vmem:[%s4 + $0x58] sm:$0xff]
    %v2131 = vld [vmem:[%s4 + $0x60] sm:$0xff]
    %v2132 = vld [vmem:[%s4 + $0x68] sm:$0xff]
    %v2133 = vld [vmem:[%s4 + $0x70] sm:$0xff]
    %v2134 = vld [vmem:[%s4 + $0x78] sm:$0xff]
    %v2135 = vld [vmem:[#allocation2] sm:$0x1]
    %v2137 = vlaneseq
    %v2138 = vshrl.u32 %v2137, 7
    %v2139 = vsub.s32 0, %v2138
    %v2140 = vrot.slane %v2135, %v2139
    %v2144 = vrot.slane %v2117, 7
    %v2145 = vrot.slane %v2118, 6
    %v2146 = vsel %vm517, %v2145, %v2144
    %2148 = vmatprep.subr.mxu0 0.0
    %2149 = vmatpush1.msra.mxu0 %v2119
    %2150 = vmatprep.subr.mxu0 0.0
    %2151 = vmatpush1.msra.mxu0 %v2120
    %2152 = vmatprep.subr.mxu0 0.0
    %2153 = vmatpush1.msra.mxu0 %v2121
    %2154 = vmatprep.subr.mxu0 0.0
    %2155 = vmatpush1.msra.mxu0 %v2122
    %2156 = vmatprep.subr.mxu0 0.0
    %2157 = vmatpush1.msra.mxu0 %v2123
    %2158 = vmatprep.subr.mxu0 0.0
    %2159 = vmatpush1.msra.mxu0 %v2124
    %2160 = vmatprep.subr.mxu0 0.0
    %2161 = vmatpush1.msra.mxu0 %v2125
    %2162 = vmatprep.subr.mxu0 0.0
    %2163 = vmatpush1.msra.mxu0 %v2126
    %2164 = vmatprep.subr.mxu0 0.0
    %2165 = vmatpush1.msra.mxu0 %v2127
    %2166 = vmatprep.subr.mxu0 0.0
    %2167 = vmatpush1.msra.mxu0 %v2128
    %2168 = vmatprep.subr.mxu0 0.0
    %2169 = vmatpush1.msra.mxu0 %v2129
    %2170 = vmatprep.subr.mxu0 0.0
    %2171 = vmatpush1.msra.mxu0 %v2130
    %2172 = vmatprep.subr.mxu0 0.0
    %2173 = vmatpush1.msra.mxu0 %v2131
    %2174 = vmatprep.subr.mxu0 0.0
    %2175 = vmatpush1.msra.mxu0 %v2132
    %2176 = vmatprep.subr.mxu0 0.0
    %2177 = vmatpush1.msra.mxu0 %v2133
    %2178 = vmatprep.subr.mxu0 0.0
    %2179 = vmatpush1.msra.mxu0 %v2134
    %2180 = vmatprep.subr.mxu0 0.0
    %2181 = vmatpush1.msra.mxu0 0.0
    %2182 = vmatprep.subr.mxu0 0.0
    %2183 = vmatpush1.msra.mxu0 0.0
    %2184 = vmatprep.subr.mxu0 0.0
    %2185 = vmatpush1.msra.mxu0 0.0
    %2186 = vmatprep.subr.mxu0 0.0
    %2187 = vmatpush1.msra.mxu0 0.0
    %2188 = vmatprep.subr.mxu0 0.0
    %2189 = vmatpush1.msra.mxu0 0.0
    %2190 = vmatprep.subr.mxu0 0.0
    %2191 = vmatpush1.msra.mxu0 0.0
    %2192 = vmatprep.subr.mxu0 0.0
    %2193 = vmatpush1.msra.mxu0 0.0
    %2194 = vmatprep.subr.mxu0 0.0
    %2195 = vmatpush1.msra.mxu0 0.0
    %2196 = vmatprep.subr.mxu0 0.0
    %2197 = vmatpush1.msra.mxu0 0.0
    %2198 = vmatprep.subr.mxu0 0.0
    %2199 = vmatpush1.msra.mxu0 0.0
    %2200 = vmatprep.subr.mxu0 0.0
    %2201 = vmatpush1.msra.mxu0 0.0
    %2202 = vmatprep.subr.mxu0 0.0
    %2203 = vmatpush1.msra.mxu0 0.0
    %2204 = vmatprep.subr.mxu0 0.0
    %2205 = vmatpush1.msra.mxu0 0.0
    %2206 = vmatprep.subr.mxu0 0.0
    %2207 = vmatpush1.msra.mxu0 0.0
    %2208 = vmatprep.subr.mxu0 0.0
    %2209 = vmatpush1.msra.mxu0 0.0
    %2210 = vmatprep.subr.mxu0 0.0
    %2211 = vmatpush1.msra.mxu0 0.0
    %2212 = vmatprep.mubr.f32.mxu0 0.0
    %2213 = vmatmul.mubr.f32.gmra.mrb[0].mxu0 %v2146
    %v2214 = vpop.f32.mrb[0].mxu0
    %v2215 = vadd.f32 %v2140, %v2214
    %v2216 = vpop.f32.mrb[0].mxu0
    %2217 = vdwg.mxu0
    %v2218 = vxor.u32 %v2215, 2147483648
    %v2219 = vmul.f32 %v2218, 1.442695
    %v2220 = vpow.pop %v2219
    %v2221 = vadd.f32 %v2220, 1.0
    %v2222 = vrcp.pop %v2221
    %v2223 = vmul.f32 1.0, %v2222
    %vm2224 = vcmask 1024
    %2225 = vst.msk [vmem:[%s6] sm:$0x3] %vm2224, %v2223
    // Predicated region
    $region30: #{tpu_custom_call.1} parent=1 // pred_check
      _
    $region31: #{tpu_custom_call.1} parent=1 // pred_check_branch
      %2227 = sbr.rel (0) target = $region33
    $region32: #{tpu_custom_call.1} parent=1 // pred_region
      _
    $region33: #{tpu_custom_call.1} parent=1 // pred_fallthru
      _
    // Predicated region
    $region34: #{tpu_custom_call.1} parent=1 // pred_check
      _
    $region35: #{tpu_custom_call.1} parent=1 // pred_check_branch
      %2229 = sbr.rel (0) target = $region37
    $region36: #{tpu_custom_call.1} parent=1 // pred_region
      _
    $region37: #{tpu_custom_call.1} parent=1 // pred_fallthru
      _
    %2230 = vsyncpa [#allocation4], 1

</llo_original>
